<compile_context>
chip_gen: v5e
topology: v5e:2x2
jax: 0.10.0
libtpu: 0.0.40
codegen_flags: <defaults>
</compile_context>

<pallas_src>
import functools

import jax
import jax.numpy as jnp
from jax.experimental import pallas as pl
from jax.experimental.pallas import tpu as pltpu

EPS = 1e-5


# ---------------------------------------------------------------------------
# Fused Res2Net block kernel.  Activations are (C, M_tile), pixels on lanes.
# ---------------------------------------------------------------------------
def res2net_block_kernel(
    x_ref,                        # (C, M)  input tile (whole images)
    mask_ref,                     # (9, M)  per-tap zero-padding masks (f32)
    w11_ref, b11_ref,             # conv1_1 : (4*Cp, C),   (4*Cp, 1)   chunk-stacked+padded
    wb0_ref, bb0_ref,             # conv3_1 : (Cp, 9*Cp),  (Cp, 1)     tap-stacked+padded
    wb1_ref, bb1_ref,             # dconv5_1
    wb2_ref, bb2_ref,             # dconv7_1
    wb3_ref, bb3_ref,             # dconv9_1
    w12_ref, b12_ref,             # conv1_2 : (C, 4*Cp),   (C, 1)
    ws_ref, bs_ref,               # convs   : (C, 9*C),    (C, 1)
    o_ref,                        # (C, M)
    *, W, ci_pad,
):
    C, M = x_ref.shape
    x_in = x_ref[...].astype(jnp.float32)
    masks = mask_ref[...]                                   # (9, M) f32

    def dense(x_cm, w_ref, b_ref):
        y = jnp.dot(w_ref[...], x_cm.astype(w_ref.dtype),
                    preferred_element_type=jnp.float32)
        return jnp.maximum(y + b_ref[...], 0.0)

    def conv3x3(x_cm, w_ref, b_ref):
        # One matmul per conv: taps stacked along the contraction axis.
        taps = []
        t = 0
        for dy in (-1, 0, 1):
            for dx in (-1, 0, 1):
                shift = (-(dy * W + dx)) % M                # out[m] <- x[m + dy*W + dx]
                s = pltpu.roll(x_cm, shift=shift, axis=1) if shift else x_cm
                if dy != 0 or dx != 0:                      # center-tap mask is all ones
                    s = s * masks[t:t + 1, :]
                taps.append(s)
                t += 1
        stacked = jnp.concatenate(taps, axis=0)             # (9*Cin, M), 8-row aligned pieces
        y = jnp.dot(w_ref[...], stacked.astype(w_ref.dtype),
                    preferred_element_type=jnp.float32)
        return jnp.maximum(y + b_ref[...], 0.0)

    # conv1_1 directly emits the chunk-stacked, sublane-padded layout (4*Cp, M);
    # torch.chunk(x, 4, dim=1) == aligned 8-row slices of it.
    chunks = dense(x_in, w11_ref, b11_ref)
    c0 = chunks[0 * ci_pad:1 * ci_pad, :]
    c1 = chunks[1 * ci_pad:2 * ci_pad, :]
    c2 = chunks[2 * ci_pad:3 * ci_pad, :]
    c3 = chunks[3 * ci_pad:4 * ci_pad, :]

    x0 = conv3x3(c0, wb0_ref, bb0_ref)                      # conv3_1
    x1 = conv3x3(c1 + x0, wb1_ref, bb1_ref)                 # dconv5_1
    x2 = conv3x3(c2 + x1, wb2_ref, bb2_ref)                 # dconv7_1
    x3 = conv3x3(c3 + x2, wb3_ref, bb3_ref)                 # dconv9_1

    cat = jnp.concatenate((x0, x1, x2, x3), axis=0)         # (4*Cp, M), aligned
    xx = dense(cat, w12_ref, b12_ref) + x_in                # conv1_2 + residual
    o_ref[...] = conv3x3(xx, ws_ref, bs_ref).astype(o_ref.dtype)   # convs


# ---------------------------------------------------------------------------
# Wrapper: one pallas_call, grid over groups of whole images.
# ---------------------------------------------------------------------------
def _make_tap_masks(images_per_block, H, W):
    """(9, M_tile) f32 validity masks, tap order (dy,dx) in {-1,0,1}^2 row-major."""
    M = images_per_block * H * W
    m = jnp.arange(M, dtype=jnp.int32)
    hh = (m // W) % H
    ww = m % W
    rows = []
    for dy in (-1, 0, 1):
        for dx in (-1, 0, 1):
            valid = ((hh + dy >= 0) & (hh + dy < H) &
                     (ww + dx >= 0) & (ww + dx < W))
            rows.append(valid.astype(jnp.float32))
    return jnp.stack(rows, axis=0)


def _pick_images_per_block(N, HW, bytes_per_lane,
                           target_lanes=512, vmem_budget=24 * 1024 * 1024):
    """Largest-enough divisor of N so the tile is lane-dense and fits the VMEM budget."""
    ok = [g for g in range(1, N + 1)
          if N % g == 0 and (g * HW) % 128 == 0
          and g * HW * bytes_per_lane <= vmem_budget]
    if not ok:
        return N                       # whole batch; block == full array dims
    for g in ok:
        if g * HW >= target_lanes:
            return g
    return ok[-1]


@functools.partial(jax.jit, static_argnames=("images_per_block", "mxu_dtype"))
def res2net_forward_pallas(x_nchw, folded, *, images_per_block=None,
                           mxu_dtype=jnp.float32):
    N, C, H, W = x_nchw.shape
    HW = H * W
    ci_pad = folded["wb0"].shape[0]

    if images_per_block is None:
        # rough upper bound on live f32 rows per lane inside the kernel
        rows_live = 12 * C + 12 * ci_pad + 9 * C
        images_per_block = _pick_images_per_block(N, HW, 4 * rows_live)
    assert N % images_per_block == 0
    M_tile = images_per_block * HW
    M = N * HW
    grid = (N // images_per_block,)

    # lane-dense activation layout: (C, N*H*W), pixels on the lane axis.
    x_cm = jnp.transpose(x_nchw, (1, 0, 2, 3)).reshape(C, M)
    masks = _make_tap_masks(images_per_block, H, W)          # identical for every tile

    def wcast(a):                                            # MXU operand dtype only
        return a.astype(mxu_dtype)

    args = (
        x_cm, masks,
        wcast(folded["w11"]), folded["b11"],
        wcast(folded["wb0"]), folded["bb0"],
        wcast(folded["wb1"]), folded["bb1"],
        wcast(folded["wb2"]), folded["bb2"],
        wcast(folded["wb3"]), folded["bb3"],
        wcast(folded["w12"]), folded["b12"],
        wcast(folded["ws"]), folded["bs"],
    )

    def const_spec(a):                                       # VMEM-resident across steps
        return pl.BlockSpec(a.shape, lambda n: (0,) * a.ndim)

    act_spec = pl.BlockSpec((C, M_tile), lambda n: (0, n))
    in_specs = [act_spec] + [const_spec(a) for a in args[1:]]

    out_cm = pl.pallas_call(
        functools.partial(res2net_block_kernel, W=W, ci_pad=ci_pad),
        out_shape=jax.ShapeDtypeStruct((C, M), x_nchw.dtype),
        grid=grid,
        in_specs=in_specs,
        out_specs=act_spec,
        compiler_params=pltpu.CompilerParams(
            dimension_semantics=("parallel",),               # shards tiles across TCs (v7x)
            vmem_limit_bytes=48 * 1024 * 1024),
    )(*args)

    return jnp.transpose(out_cm.reshape(C, N, H, W), (1, 0, 2, 3))


# ---------------------------------------------------------------------------
# Parameter construction + BatchNorm folding / weight pre-layout (done once).
# ---------------------------------------------------------------------------
def _init_bn(key, c):
    k1, k2, k3, k4 = jax.random.split(key, 4)
    return dict(
        gamma=jax.random.uniform(k1, (c,), jnp.float32, 0.5, 1.5),
        beta=0.1 * jax.random.normal(k2, (c,), jnp.float32),
        mean=0.1 * jax.random.normal(k3, (c,), jnp.float32),
        var=jax.random.uniform(k4, (c,), jnp.float32, 0.5, 1.5),
    )


def init_cbr1x1(key, cin, cout):
    kw, kb, kbn = jax.random.split(key, 3)
    return dict(
        w=0.2 * jax.random.normal(kw, (cout, cin), jnp.float32),
        b=0.1 * jax.random.normal(kb, (cout,), jnp.float32),
        bn=_init_bn(kbn, cout),
    )


def init_cbr3x3(key, cin, cout):
    kw, kbn = jax.random.split(key, 2)
    return dict(
        w=0.2 * jax.random.normal(kw, (cout, cin, 3, 3), jnp.float32),   # OIHW
        bn=_init_bn(kbn, cout),
    )


def init_res2net(key, channel, inchannel):
    assert channel % 4 == 0 and inchannel == channel // 4
    keys = jax.random.split(key, 7)
    return dict(
        conv1_1=init_cbr1x1(keys[0], channel, channel),
        conv3_1=init_cbr3x3(keys[1], inchannel, inchannel),
        dconv5_1=init_cbr3x3(keys[2], inchannel, inchannel),
        dconv7_1=init_cbr3x3(keys[3], inchannel, inchannel),
        dconv9_1=init_cbr3x3(keys[4], inchannel, inchannel),
        conv1_2=init_cbr1x1(keys[5], channel, channel),
        convs=init_cbr3x3(keys[6], channel, channel),
    )


def _bn_scale_shift(bn):
    scale = bn["gamma"] / jnp.sqrt(bn["var"] + EPS)
    shift = bn["beta"] - bn["mean"] * scale
    return scale, shift


def fold_res2net(params):
    """Fold BN into the convs and pre-layout weights for the kernel (done once)."""
    C = params["conv1_1"]["w"].shape[0]
    ci = params["conv3_1"]["w"].shape[0]
    ci_pad = max(8, ((ci + 7) // 8) * 8)       # sublane-aligned branch width (f32 tile = 8)
    n_chunks = C // ci
    assert C % 8 == 0 and n_chunks == 4

    # conv1_1: (C, C) -> chunk-stacked + padded (4*Cp, C); pad rows are zero so the
    # padded chunk channels are relu(0)=0 everywhere.
    s, sh = _bn_scale_shift(params["conv1_1"]["bn"])
    w_eff = params["conv1_1"]["w"] * s[:, None]
    b_eff = params["conv1_1"]["b"] * s + sh
    w11 = jnp.zeros((n_chunks * ci_pad, C), jnp.float32)
    b11 = jnp.zeros((n_chunks * ci_pad, 1), jnp.float32)
    for k in range(n_chunks):
        w11 = w11.at[k * ci_pad:k * ci_pad + ci].set(w_eff[k * ci:(k + 1) * ci])
        b11 = b11.at[k * ci_pad:k * ci_pad + ci, 0].set(b_eff[k * ci:(k + 1) * ci])

    # branch 3x3 convs: (ci, ci, 3, 3) -> tap-stacked + padded (Cp, 9*Cp).
    def fold_branch(p):
        sc, shf = _bn_scale_shift(p["bn"])
        w = p["w"] * sc[:, None, None, None]
        wp = jnp.zeros((ci_pad, 9 * ci_pad), jnp.float32)
        for t in range(9):
            dy, dx = t // 3, t % 3
            wp = wp.at[:ci, t * ci_pad:t * ci_pad + ci].set(w[:, :, dy, dx])
        bp = jnp.zeros((ci_pad, 1), jnp.float32).at[:ci, 0].set(shf)
        return wp, bp

    wb0, bb0 = fold_branch(params["conv3_1"])
    wb1, bb1 = fold_branch(params["dconv5_1"])
    wb2, bb2 = fold_branch(params["dconv7_1"])
    wb3, bb3 = fold_branch(params["dconv9_1"])

    # conv1_2: (C, C) -> (C, 4*Cp) with zero columns for pad channels.
    s, sh = _bn_scale_shift(params["conv1_2"]["bn"])
    w_eff = params["conv1_2"]["w"] * s[:, None]
    b12 = (params["conv1_2"]["b"] * s + sh)[:, None]
    w12 = jnp.zeros((C, n_chunks * ci_pad), jnp.float32)
    for k in range(n_chunks):
        w12 = w12.at[:, k * ci_pad:k * ci_pad + ci].set(w_eff[:, k * ci:(k + 1) * ci])

    # final convs: (C, C, 3, 3) -> tap-stacked (C, 9*C).
    s, sh = _bn_scale_shift(params["convs"]["bn"])
    w_eff = params["convs"]["w"] * s[:, None, None, None]
    ws = jnp.transpose(w_eff, (0, 2, 3, 1)).reshape(C, 9 * C)
    bs = sh[:, None]

    return dict(w11=w11, b11=b11, wb0=wb0, bb0=bb0, wb1=wb1, bb1=bb1,
                wb2=wb2, bb2=bb2, wb3=wb3, bb3=bb3, w12=w12, b12=b12,
                ws=ws, bs=bs)


# ---------------------------------------------------------------------------
# Pure-JAX reference (independent path via lax.conv) for correctness check.
# ---------------------------------------------------------------------------
def _ref_cbr1x1(x, p):
    scale, shift = _bn_scale_shift(p["bn"])
    y = jnp.einsum("nhwc,oc->nhwo", x, p["w"]) + p["b"]
    return jnp.maximum(y * scale + shift, 0.0)


def _ref_cbr3x3(x, p):
    scale, shift = _bn_scale_shift(p["bn"])
    w_hwio = jnp.transpose(p["w"], (2, 3, 1, 0))
    y = jax.lax.conv_general_dilated(
        x, w_hwio, window_strides=(1, 1), padding=((1, 1), (1, 1)),
        dimension_numbers=("NHWC", "HWIO", "NHWC"))
    return jnp.maximum(y * scale + shift, 0.0)


def res2net_forward_ref(cur_nhwc, params):
    x = _ref_cbr1x1(cur_nhwc, params["conv1_1"])
    xc = jnp.split(x, 4, axis=-1)
    x0 = _ref_cbr3x3(xc[0], params["conv3_1"])
    x1 = _ref_cbr3x3(xc[1] + x0, params["dconv5_1"])
    x2 = _ref_cbr3x3(xc[2] + x1, params["dconv7_1"])
    x3 = _ref_cbr3x3(xc[3] + x2, params["dconv9_1"])
    cat = jnp.concatenate((x0, x1, x2, x3), axis=-1)
    xx = _ref_cbr1x1(cat, params["conv1_2"]) + cur_nhwc
    return _ref_cbr3x3(xx, params["convs"])


# ---------------------------------------------------------------------------
if __name__ == "__main__":
    channel, inchannel = 16, 4          # torch.chunk(x, 4, dim=1) => inchannel = channel // 4
    N, H, W = 4, 8, 8                   # 2 images per tile -> M_tile = 128, grid = (2,)

    key = jax.random.PRNGKey(0)
    k_in, k_params = jax.random.split(key)

    cur_nchw = jax.random.normal(k_in, (N, channel, H, W), jnp.float32)
    params = init_res2net(k_params, channel, inchannel)
    folded = fold_res2net(params)       # BN folding / weight layout hoisted out of forward

    # f32 MXU path (v5e-friendly), tight check against the lax.conv reference.
    out_nchw = jax.block_until_ready(
        res2net_forward_pallas(cur_nchw, folded, images_per_block=2))

    ref_nhwc = res2net_forward_ref(jnp.transpose(cur_nchw, (0, 2, 3, 1)), params)
    ref_nchw = jnp.transpose(ref_nhwc, (0, 3, 1, 2))

    assert out_nchw.shape == (N, channel, H, W)
    err = float(jnp.max(jnp.abs(out_nchw - ref_nchw)))
    assert jnp.allclose(out_nchw, ref_nchw, atol=1e-4, rtol=1e-3), err

    # bf16 MXU-operand path (v6e/v7x): storage & elementwise stay f32, dots in bf16
    # with f32 accumulation; loose sanity check only.
    out_bf16 = jax.block_until_ready(
        res2net_forward_pallas(cur_nchw, folded, images_per_block=2,
                               mxu_dtype=jnp.bfloat16))
    err_bf16 = float(jnp.max(jnp.abs(out_bf16 - ref_nchw)))
    assert jnp.isfinite(err_bf16) and err_bf16 < 0.5, err_bf16

    print("KERNEL_OK")
</pallas_src>

<mosaic_0001>
module attributes {stable_mosaic.version = 11 : i64} {
  func.func @res2net_block_kernel(%arg0: i32, %arg1: memref<16x128xf32, #tpu.memory_space<vmem>>, %arg2: memref<9x128xf32, #tpu.memory_space<vmem>>, %arg3: memref<32x16xf32, #tpu.memory_space<vmem>>, %arg4: memref<32x1xf32, #tpu.memory_space<vmem>>, %arg5: memref<8x72xf32, #tpu.memory_space<vmem>>, %arg6: memref<8x1xf32, #tpu.memory_space<vmem>>, %arg7: memref<8x72xf32, #tpu.memory_space<vmem>>, %arg8: memref<8x1xf32, #tpu.memory_space<vmem>>, %arg9: memref<8x72xf32, #tpu.memory_space<vmem>>, %arg10: memref<8x1xf32, #tpu.memory_space<vmem>>, %arg11: memref<8x72xf32, #tpu.memory_space<vmem>>, %arg12: memref<8x1xf32, #tpu.memory_space<vmem>>, %arg13: memref<16x32xf32, #tpu.memory_space<vmem>>, %arg14: memref<16x1xf32, #tpu.memory_space<vmem>>, %arg15: memref<16x144xf32, #tpu.memory_space<vmem>>, %arg16: memref<16x1xf32, #tpu.memory_space<vmem>>, %arg17: memref<16x128xf32, #tpu.memory_space<vmem>>) attributes {dimension_semantics = [#tpu.dimension_semantics<parallel>], iteration_bounds = array<i64: 2>, scalar_prefetch = 0 : i64, scratch_operands = 0 : i64, tpu.core_type = #tpu.core_type<tc>, window_params = [{transform_indices = @transform_0, window_bounds = array<i64: 16, 128>}, {pipeline_mode = #tpu.pipeline_mode<synchronous>, transform_indices = @transform_1, window_bounds = array<i64: 9, 128>}, {pipeline_mode = #tpu.pipeline_mode<synchronous>, transform_indices = @transform_2, window_bounds = array<i64: 32, 16>}, {pipeline_mode = #tpu.pipeline_mode<synchronous>, transform_indices = @transform_3, window_bounds = array<i64: 32, 1>}, {pipeline_mode = #tpu.pipeline_mode<synchronous>, transform_indices = @transform_4, window_bounds = array<i64: 8, 72>}, {pipeline_mode = #tpu.pipeline_mode<synchronous>, transform_indices = @transform_5, window_bounds = array<i64: 8, 1>}, {pipeline_mode = #tpu.pipeline_mode<synchronous>, transform_indices = @transform_6, window_bounds = array<i64: 8, 72>}, {pipeline_mode = #tpu.pipeline_mode<synchronous>, transform_indices = @transform_7, window_bounds = array<i64: 8, 1>}, {pipeline_mode = #tpu.pipeline_mode<synchronous>, transform_indices = @transform_8, window_bounds = array<i64: 8, 72>}, {pipeline_mode = #tpu.pipeline_mode<synchronous>, transform_indices = @transform_9, window_bounds = array<i64: 8, 1>}, {pipeline_mode = #tpu.pipeline_mode<synchronous>, transform_indices = @transform_10, window_bounds = array<i64: 8, 72>}, {pipeline_mode = #tpu.pipeline_mode<synchronous>, transform_indices = @transform_11, window_bounds = array<i64: 8, 1>}, {pipeline_mode = #tpu.pipeline_mode<synchronous>, transform_indices = @transform_12, window_bounds = array<i64: 16, 32>}, {pipeline_mode = #tpu.pipeline_mode<synchronous>, transform_indices = @transform_13, window_bounds = array<i64: 16, 1>}, {pipeline_mode = #tpu.pipeline_mode<synchronous>, transform_indices = @transform_14, window_bounds = array<i64: 16, 144>}, {pipeline_mode = #tpu.pipeline_mode<synchronous>, transform_indices = @transform_15, window_bounds = array<i64: 16, 1>}, {transform_indices = @transform_16, window_bounds = array<i64: 16, 128>}]} {
    %c0 = arith.constant 0 : index
    %c0_0 = arith.constant 0 : index
    %0 = vector.load %arg1[%c0, %c0_0] : memref<16x128xf32, #tpu.memory_space<vmem>>, vector<16x128xf32>
    %c0_1 = arith.constant 0 : index
    %c0_2 = arith.constant 0 : index
    %1 = vector.load %arg2[%c0_1, %c0_2] : memref<9x128xf32, #tpu.memory_space<vmem>>, vector<9x128xf32>
    %c0_3 = arith.constant 0 : index
    %c0_4 = arith.constant 0 : index
    %2 = vector.load %arg3[%c0_3, %c0_4] : memref<32x16xf32, #tpu.memory_space<vmem>>, vector<32x16xf32>
    %cst = arith.constant dense<0.000000e+00> : vector<32x128xf32>
    %3 = tpu.matmul %2, %0, %cst {dimension_numbers = #tpu.dot_dimension_numbers<[1], [0], [0], [1], [0, 0, 1, 1], [], []>} : vector<32x16xf32>, vector<16x128xf32>, vector<32x128xf32> -> vector<32x128xf32>
    %c0_5 = arith.constant 0 : index
    %c0_6 = arith.constant 0 : index
    %4 = vector.load %arg4[%c0_5, %c0_6] : memref<32x1xf32, #tpu.memory_space<vmem>>, vector<32x1xf32>
    %5 = vector.broadcast %4 : vector<32x1xf32> to vector<32x128xf32>
    %6 = arith.addf %3, %5 : vector<32x128xf32>
    %cst_7 = arith.constant 0.000000e+00 : f32
    %7 = vector.broadcast %cst_7 : f32 to vector<32x128xf32>
    %8 = arith.maximumf %6, %7 : vector<32x128xf32>
    %9 = vector.extract_strided_slice %8 {offsets = [0, 0], sizes = [8, 128], strides = [1, 1]} : vector<32x128xf32> to vector<8x128xf32>
    %10 = vector.extract_strided_slice %8 {offsets = [8, 0], sizes = [8, 128], strides = [1, 1]} : vector<32x128xf32> to vector<8x128xf32>
    %11 = vector.extract_strided_slice %8 {offsets = [16, 0], sizes = [8, 128], strides = [1, 1]} : vector<32x128xf32> to vector<8x128xf32>
    %12 = vector.extract_strided_slice %8 {offsets = [24, 0], sizes = [8, 128], strides = [1, 1]} : vector<32x128xf32> to vector<8x128xf32>
    %c9_i32 = arith.constant 9 : i32
    %13 = tpu.dynamic_rotate %9 by %c9_i32 dim 1 : vector<8x128xf32>, i32 -> vector<8x128xf32>
    %14 = vector.extract_strided_slice %1 {offsets = [0, 0], sizes = [1, 128], strides = [1, 1]} : vector<9x128xf32> to vector<1x128xf32>
    %15 = vector.broadcast %14 : vector<1x128xf32> to vector<8x128xf32>
    %16 = arith.mulf %13, %15 : vector<8x128xf32>
    %c8_i32 = arith.constant 8 : i32
    %17 = tpu.dynamic_rotate %9 by %c8_i32 dim 1 : vector<8x128xf32>, i32 -> vector<8x128xf32>
    %18 = vector.extract_strided_slice %1 {offsets = [1, 0], sizes = [1, 128], strides = [1, 1]} : vector<9x128xf32> to vector<1x128xf32>
    %19 = vector.broadcast %18 : vector<1x128xf32> to vector<8x128xf32>
    %20 = arith.mulf %17, %19 : vector<8x128xf32>
    %c7_i32 = arith.constant 7 : i32
    %21 = tpu.dynamic_rotate %9 by %c7_i32 dim 1 : vector<8x128xf32>, i32 -> vector<8x128xf32>
    %22 = vector.extract_strided_slice %1 {offsets = [2, 0], sizes = [1, 128], strides = [1, 1]} : vector<9x128xf32> to vector<1x128xf32>
    %23 = vector.broadcast %22 : vector<1x128xf32> to vector<8x128xf32>
    %24 = arith.mulf %21, %23 : vector<8x128xf32>
    %c1_i32 = arith.constant 1 : i32
    %25 = tpu.dynamic_rotate %9 by %c1_i32 dim 1 : vector<8x128xf32>, i32 -> vector<8x128xf32>
    %26 = vector.extract_strided_slice %1 {offsets = [3, 0], sizes = [1, 128], strides = [1, 1]} : vector<9x128xf32> to vector<1x128xf32>
    %27 = vector.broadcast %26 : vector<1x128xf32> to vector<8x128xf32>
    %28 = arith.mulf %25, %27 : vector<8x128xf32>
    %c127_i32 = arith.constant 127 : i32
    %29 = tpu.dynamic_rotate %9 by %c127_i32 dim 1 : vector<8x128xf32>, i32 -> vector<8x128xf32>
    %30 = vector.extract_strided_slice %1 {offsets = [5, 0], sizes = [1, 128], strides = [1, 1]} : vector<9x128xf32> to vector<1x128xf32>
    %31 = vector.broadcast %30 : vector<1x128xf32> to vector<8x128xf32>
    %32 = arith.mulf %29, %31 : vector<8x128xf32>
    %c121_i32 = arith.constant 121 : i32
    %33 = tpu.dynamic_rotate %9 by %c121_i32 dim 1 : vector<8x128xf32>, i32 -> vector<8x128xf32>
    %34 = vector.extract_strided_slice %1 {offsets = [6, 0], sizes = [1, 128], strides = [1, 1]} : vector<9x128xf32> to vector<1x128xf32>
    %35 = vector.broadcast %34 : vector<1x128xf32> to vector<8x128xf32>
    %36 = arith.mulf %33, %35 : vector<8x128xf32>
    %c120_i32 = arith.constant 120 : i32
    %37 = tpu.dynamic_rotate %9 by %c120_i32 dim 1 : vector<8x128xf32>, i32 -> vector<8x128xf32>
    %38 = vector.extract_strided_slice %1 {offsets = [7, 0], sizes = [1, 128], strides = [1, 1]} : vector<9x128xf32> to vector<1x128xf32>
    %39 = vector.broadcast %38 : vector<1x128xf32> to vector<8x128xf32>
    %40 = arith.mulf %37, %39 : vector<8x128xf32>
    %c119_i32 = arith.constant 119 : i32
    %41 = tpu.dynamic_rotate %9 by %c119_i32 dim 1 : vector<8x128xf32>, i32 -> vector<8x128xf32>
    %42 = vector.extract_strided_slice %1 {offsets = [8, 0], sizes = [1, 128], strides = [1, 1]} : vector<9x128xf32> to vector<1x128xf32>
    %43 = vector.broadcast %42 : vector<1x128xf32> to vector<8x128xf32>
    %44 = arith.mulf %41, %43 : vector<8x128xf32>
    %45 = tpu.concatenate %16, %20, %24, %28, %9, %32, %36, %40, %44 in 0 : vector<8x128xf32>, vector<8x128xf32>, vector<8x128xf32>, vector<8x128xf32>, vector<8x128xf32>, vector<8x128xf32>, vector<8x128xf32>, vector<8x128xf32>, vector<8x128xf32> -> vector<72x128xf32>
    %c0_8 = arith.constant 0 : index
    %c0_9 = arith.constant 0 : index
    %46 = vector.load %arg5[%c0_8, %c0_9] : memref<8x72xf32, #tpu.memory_space<vmem>>, vector<8x72xf32>
    %cst_10 = arith.constant dense<0.000000e+00> : vector<8x128xf32>
    %47 = tpu.matmul %46, %45, %cst_10 {dimension_numbers = #tpu.dot_dimension_numbers<[1], [0], [0], [1], [0, 0, 1, 1], [], []>} : vector<8x72xf32>, vector<72x128xf32>, vector<8x128xf32> -> vector<8x128xf32>
    %c0_11 = arith.constant 0 : index
    %c0_12 = arith.constant 0 : index
    %48 = vector.load %arg6[%c0_11, %c0_12] : memref<8x1xf32, #tpu.memory_space<vmem>>, vector<8x1xf32>
    %49 = vector.broadcast %48 : vector<8x1xf32> to vector<8x128xf32>
    %50 = arith.addf %47, %49 : vector<8x128xf32>
    %cst_13 = arith.constant 0.000000e+00 : f32
    %51 = vector.broadcast %cst_13 : f32 to vector<8x128xf32>
    %52 = arith.maximumf %50, %51 : vector<8x128xf32>
    %53 = arith.addf %10, %52 : vector<8x128xf32>
    %c9_i32_14 = arith.constant 9 : i32
    %54 = tpu.dynamic_rotate %53 by %c9_i32_14 dim 1 : vector<8x128xf32>, i32 -> vector<8x128xf32>
    %55 = vector.extract_strided_slice %1 {offsets = [0, 0], sizes = [1, 128], strides = [1, 1]} : vector<9x128xf32> to vector<1x128xf32>
    %56 = vector.broadcast %55 : vector<1x128xf32> to vector<8x128xf32>
    %57 = arith.mulf %54, %56 : vector<8x128xf32>
    %c8_i32_15 = arith.constant 8 : i32
    %58 = tpu.dynamic_rotate %53 by %c8_i32_15 dim 1 : vector<8x128xf32>, i32 -> vector<8x128xf32>
    %59 = vector.extract_strided_slice %1 {offsets = [1, 0], sizes = [1, 128], strides = [1, 1]} : vector<9x128xf32> to vector<1x128xf32>
    %60 = vector.broadcast %59 : vector<1x128xf32> to vector<8x128xf32>
    %61 = arith.mulf %58, %60 : vector<8x128xf32>
    %c7_i32_16 = arith.constant 7 : i32
    %62 = tpu.dynamic_rotate %53 by %c7_i32_16 dim 1 : vector<8x128xf32>, i32 -> vector<8x128xf32>
    %63 = vector.extract_strided_slice %1 {offsets = [2, 0], sizes = [1, 128], strides = [1, 1]} : vector<9x128xf32> to vector<1x128xf32>
    %64 = vector.broadcast %63 : vector<1x128xf32> to vector<8x128xf32>
    %65 = arith.mulf %62, %64 : vector<8x128xf32>
    %c1_i32_17 = arith.constant 1 : i32
    %66 = tpu.dynamic_rotate %53 by %c1_i32_17 dim 1 : vector<8x128xf32>, i32 -> vector<8x128xf32>
    %67 = vector.extract_strided_slice %1 {offsets = [3, 0], sizes = [1, 128], strides = [1, 1]} : vector<9x128xf32> to vector<1x128xf32>
    %68 = vector.broadcast %67 : vector<1x128xf32> to vector<8x128xf32>
    %69 = arith.mulf %66, %68 : vector<8x128xf32>
    %c127_i32_18 = arith.constant 127 : i32
    %70 = tpu.dynamic_rotate %53 by %c127_i32_18 dim 1 : vector<8x128xf32>, i32 -> vector<8x128xf32>
    %71 = vector.extract_strided_slice %1 {offsets = [5, 0], sizes = [1, 128], strides = [1, 1]} : vector<9x128xf32> to vector<1x128xf32>
    %72 = vector.broadcast %71 : vector<1x128xf32> to vector<8x128xf32>
    %73 = arith.mulf %70, %72 : vector<8x128xf32>
    %c121_i32_19 = arith.constant 121 : i32
    %74 = tpu.dynamic_rotate %53 by %c121_i32_19 dim 1 : vector<8x128xf32>, i32 -> vector<8x128xf32>
    %75 = vector.extract_strided_slice %1 {offsets = [6, 0], sizes = [1, 128], strides = [1, 1]} : vector<9x128xf32> to vector<1x128xf32>
    %76 = vector.broadcast %75 : vector<1x128xf32> to vector<8x128xf32>
    %77 = arith.mulf %74, %76 : vector<8x128xf32>
    %c120_i32_20 = arith.constant 120 : i32
    %78 = tpu.dynamic_rotate %53 by %c120_i32_20 dim 1 : vector<8x128xf32>, i32 -> vector<8x128xf32>
    %79 = vector.extract_strided_slice %1 {offsets = [7, 0], sizes = [1, 128], strides = [1, 1]} : vector<9x128xf32> to vector<1x128xf32>
    %80 = vector.broadcast %79 : vector<1x128xf32> to vector<8x128xf32>
    %81 = arith.mulf %78, %80 : vector<8x128xf32>
    %c119_i32_21 = arith.constant 119 : i32
    %82 = tpu.dynamic_rotate %53 by %c119_i32_21 dim 1 : vector<8x128xf32>, i32 -> vector<8x128xf32>
    %83 = vector.extract_strided_slice %1 {offsets = [8, 0], sizes = [1, 128], strides = [1, 1]} : vector<9x128xf32> to vector<1x128xf32>
    %84 = vector.broadcast %83 : vector<1x128xf32> to vector<8x128xf32>
    %85 = arith.mulf %82, %84 : vector<8x128xf32>
    %86 = tpu.concatenate %57, %61, %65, %69, %53, %73, %77, %81, %85 in 0 : vector<8x128xf32>, vector<8x128xf32>, vector<8x128xf32>, vector<8x128xf32>, vector<8x128xf32>, vector<8x128xf32>, vector<8x128xf32>, vector<8x128xf32>, vector<8x128xf32> -> vector<72x128xf32>
    %c0_22 = arith.constant 0 : index
    %c0_23 = arith.constant 0 : index
    %87 = vector.load %arg7[%c0_22, %c0_23] : memref<8x72xf32, #tpu.memory_space<vmem>>, vector<8x72xf32>
    %cst_24 = arith.constant dense<0.000000e+00> : vector<8x128xf32>
    %88 = tpu.matmul %87, %86, %cst_24 {dimension_numbers = #tpu.dot_dimension_numbers<[1], [0], [0], [1], [0, 0, 1, 1], [], []>} : vector<8x72xf32>, vector<72x128xf32>, vector<8x128xf32> -> vector<8x128xf32>
    %c0_25 = arith.constant 0 : index
    %c0_26 = arith.constant 0 : index
    %89 = vector.load %arg8[%c0_25, %c0_26] : memref<8x1xf32, #tpu.memory_space<vmem>>, vector<8x1xf32>
    %90 = vector.broadcast %89 : vector<8x1xf32> to vector<8x128xf32>
    %91 = arith.addf %88, %90 : vector<8x128xf32>
    %cst_27 = arith.constant 0.000000e+00 : f32
    %92 = vector.broadcast %cst_27 : f32 to vector<8x128xf32>
    %93 = arith.maximumf %91, %92 : vector<8x128xf32>
    %94 = arith.addf %11, %93 : vector<8x128xf32>
    %c9_i32_28 = arith.constant 9 : i32
    %95 = tpu.dynamic_rotate %94 by %c9_i32_28 dim 1 : vector<8x128xf32>, i32 -> vector<8x128xf32>
    %96 = vector.extract_strided_slice %1 {offsets = [0, 0], sizes = [1, 128], strides = [1, 1]} : vector<9x128xf32> to vector<1x128xf32>
    %97 = vector.broadcast %96 : vector<1x128xf32> to vector<8x128xf32>
    %98 = arith.mulf %95, %97 : vector<8x128xf32>
    %c8_i32_29 = arith.constant 8 : i32
    %99 = tpu.dynamic_rotate %94 by %c8_i32_29 dim 1 : vector<8x128xf32>, i32 -> vector<8x128xf32>
    %100 = vector.extract_strided_slice %1 {offsets = [1, 0], sizes = [1, 128], strides = [1, 1]} : vector<9x128xf32> to vector<1x128xf32>
    %101 = vector.broadcast %100 : vector<1x128xf32> to vector<8x128xf32>
    %102 = arith.mulf %99, %101 : vector<8x128xf32>
    %c7_i32_30 = arith.constant 7 : i32
    %103 = tpu.dynamic_rotate %94 by %c7_i32_30 dim 1 : vector<8x128xf32>, i32 -> vector<8x128xf32>
    %104 = vector.extract_strided_slice %1 {offsets = [2, 0], sizes = [1, 128], strides = [1, 1]} : vector<9x128xf32> to vector<1x128xf32>
    %105 = vector.broadcast %104 : vector<1x128xf32> to vector<8x128xf32>
    %106 = arith.mulf %103, %105 : vector<8x128xf32>
    %c1_i32_31 = arith.constant 1 : i32
    %107 = tpu.dynamic_rotate %94 by %c1_i32_31 dim 1 : vector<8x128xf32>, i32 -> vector<8x128xf32>
    %108 = vector.extract_strided_slice %1 {offsets = [3, 0], sizes = [1, 128], strides = [1, 1]} : vector<9x128xf32> to vector<1x128xf32>
    %109 = vector.broadcast %108 : vector<1x128xf32> to vector<8x128xf32>
    %110 = arith.mulf %107, %109 : vector<8x128xf32>
    %c127_i32_32 = arith.constant 127 : i32
    %111 = tpu.dynamic_rotate %94 by %c127_i32_32 dim 1 : vector<8x128xf32>, i32 -> vector<8x128xf32>
    %112 = vector.extract_strided_slice %1 {offsets = [5, 0], sizes = [1, 128], strides = [1, 1]} : vector<9x128xf32> to vector<1x128xf32>
    %113 = vector.broadcast %112 : vector<1x128xf32> to vector<8x128xf32>
    %114 = arith.mulf %111, %113 : vector<8x128xf32>
    %c121_i32_33 = arith.constant 121 : i32
    %115 = tpu.dynamic_rotate %94 by %c121_i32_33 dim 1 : vector<8x128xf32>, i32 -> vector<8x128xf32>
    %116 = vector.extract_strided_slice %1 {offsets = [6, 0], sizes = [1, 128], strides = [1, 1]} : vector<9x128xf32> to vector<1x128xf32>
    %117 = vector.broadcast %116 : vector<1x128xf32> to vector<8x128xf32>
    %118 = arith.mulf %115, %117 : vector<8x128xf32>
    %c120_i32_34 = arith.constant 120 : i32
    %119 = tpu.dynamic_rotate %94 by %c120_i32_34 dim 1 : vector<8x128xf32>, i32 -> vector<8x128xf32>
    %120 = vector.extract_strided_slice %1 {offsets = [7, 0], sizes = [1, 128], strides = [1, 1]} : vector<9x128xf32> to vector<1x128xf32>
    %121 = vector.broadcast %120 : vector<1x128xf32> to vector<8x128xf32>
    %122 = arith.mulf %119, %121 : vector<8x128xf32>
    %c119_i32_35 = arith.constant 119 : i32
    %123 = tpu.dynamic_rotate %94 by %c119_i32_35 dim 1 : vector<8x128xf32>, i32 -> vector<8x128xf32>
    %124 = vector.extract_strided_slice %1 {offsets = [8, 0], sizes = [1, 128], strides = [1, 1]} : vector<9x128xf32> to vector<1x128xf32>
    %125 = vector.broadcast %124 : vector<1x128xf32> to vector<8x128xf32>
    %126 = arith.mulf %123, %125 : vector<8x128xf32>
    %127 = tpu.concatenate %98, %102, %106, %110, %94, %114, %118, %122, %126 in 0 : vector<8x128xf32>, vector<8x128xf32>, vector<8x128xf32>, vector<8x128xf32>, vector<8x128xf32>, vector<8x128xf32>, vector<8x128xf32>, vector<8x128xf32>, vector<8x128xf32> -> vector<72x128xf32>
    %c0_36 = arith.constant 0 : index
    %c0_37 = arith.constant 0 : index
    %128 = vector.load %arg9[%c0_36, %c0_37] : memref<8x72xf32, #tpu.memory_space<vmem>>, vector<8x72xf32>
    %cst_38 = arith.constant dense<0.000000e+00> : vector<8x128xf32>
    %129 = tpu.matmul %128, %127, %cst_38 {dimension_numbers = #tpu.dot_dimension_numbers<[1], [0], [0], [1], [0, 0, 1, 1], [], []>} : vector<8x72xf32>, vector<72x128xf32>, vector<8x128xf32> -> vector<8x128xf32>
    %c0_39 = arith.constant 0 : index
    %c0_40 = arith.constant 0 : index
    %130 = vector.load %arg10[%c0_39, %c0_40] : memref<8x1xf32, #tpu.memory_space<vmem>>, vector<8x1xf32>
    %131 = vector.broadcast %130 : vector<8x1xf32> to vector<8x128xf32>
    %132 = arith.addf %129, %131 : vector<8x128xf32>
    %cst_41 = arith.constant 0.000000e+00 : f32
    %133 = vector.broadcast %cst_41 : f32 to vector<8x128xf32>
    %134 = arith.maximumf %132, %133 : vector<8x128xf32>
    %135 = arith.addf %12, %134 : vector<8x128xf32>
    %c9_i32_42 = arith.constant 9 : i32
    %136 = tpu.dynamic_rotate %135 by %c9_i32_42 dim 1 : vector<8x128xf32>, i32 -> vector<8x128xf32>
    %137 = vector.extract_strided_slice %1 {offsets = [0, 0], sizes = [1, 128], strides = [1, 1]} : vector<9x128xf32> to vector<1x128xf32>
    %138 = vector.broadcast %137 : vector<1x128xf32> to vector<8x128xf32>
    %139 = arith.mulf %136, %138 : vector<8x128xf32>
    %c8_i32_43 = arith.constant 8 : i32
    %140 = tpu.dynamic_rotate %135 by %c8_i32_43 dim 1 : vector<8x128xf32>, i32 -> vector<8x128xf32>
    %141 = vector.extract_strided_slice %1 {offsets = [1, 0], sizes = [1, 128], strides = [1, 1]} : vector<9x128xf32> to vector<1x128xf32>
    %142 = vector.broadcast %141 : vector<1x128xf32> to vector<8x128xf32>
    %143 = arith.mulf %140, %142 : vector<8x128xf32>
    %c7_i32_44 = arith.constant 7 : i32
    %144 = tpu.dynamic_rotate %135 by %c7_i32_44 dim 1 : vector<8x128xf32>, i32 -> vector<8x128xf32>
    %145 = vector.extract_strided_slice %1 {offsets = [2, 0], sizes = [1, 128], strides = [1, 1]} : vector<9x128xf32> to vector<1x128xf32>
    %146 = vector.broadcast %145 : vector<1x128xf32> to vector<8x128xf32>
    %147 = arith.mulf %144, %146 : vector<8x128xf32>
    %c1_i32_45 = arith.constant 1 : i32
    %148 = tpu.dynamic_rotate %135 by %c1_i32_45 dim 1 : vector<8x128xf32>, i32 -> vector<8x128xf32>
    %149 = vector.extract_strided_slice %1 {offsets = [3, 0], sizes = [1, 128], strides = [1, 1]} : vector<9x128xf32> to vector<1x128xf32>
    %150 = vector.broadcast %149 : vector<1x128xf32> to vector<8x128xf32>
    %151 = arith.mulf %148, %150 : vector<8x128xf32>
    %c127_i32_46 = arith.constant 127 : i32
    %152 = tpu.dynamic_rotate %135 by %c127_i32_46 dim 1 : vector<8x128xf32>, i32 -> vector<8x128xf32>
    %153 = vector.extract_strided_slice %1 {offsets = [5, 0], sizes = [1, 128], strides = [1, 1]} : vector<9x128xf32> to vector<1x128xf32>
    %154 = vector.broadcast %153 : vector<1x128xf32> to vector<8x128xf32>
    %155 = arith.mulf %152, %154 : vector<8x128xf32>
    %c121_i32_47 = arith.constant 121 : i32
    %156 = tpu.dynamic_rotate %135 by %c121_i32_47 dim 1 : vector<8x128xf32>, i32 -> vector<8x128xf32>
    %157 = vector.extract_strided_slice %1 {offsets = [6, 0], sizes = [1, 128], strides = [1, 1]} : vector<9x128xf32> to vector<1x128xf32>
    %158 = vector.broadcast %157 : vector<1x128xf32> to vector<8x128xf32>
    %159 = arith.mulf %156, %158 : vector<8x128xf32>
    %c120_i32_48 = arith.constant 120 : i32
    %160 = tpu.dynamic_rotate %135 by %c120_i32_48 dim 1 : vector<8x128xf32>, i32 -> vector<8x128xf32>
    %161 = vector.extract_strided_slice %1 {offsets = [7, 0], sizes = [1, 128], strides = [1, 1]} : vector<9x128xf32> to vector<1x128xf32>
    %162 = vector.broadcast %161 : vector<1x128xf32> to vector<8x128xf32>
    %163 = arith.mulf %160, %162 : vector<8x128xf32>
    %c119_i32_49 = arith.constant 119 : i32
    %164 = tpu.dynamic_rotate %135 by %c119_i32_49 dim 1 : vector<8x128xf32>, i32 -> vector<8x128xf32>
    %165 = vector.extract_strided_slice %1 {offsets = [8, 0], sizes = [1, 128], strides = [1, 1]} : vector<9x128xf32> to vector<1x128xf32>
    %166 = vector.broadcast %165 : vector<1x128xf32> to vector<8x128xf32>
    %167 = arith.mulf %164, %166 : vector<8x128xf32>
    %168 = tpu.concatenate %139, %143, %147, %151, %135, %155, %159, %163, %167 in 0 : vector<8x128xf32>, vector<8x128xf32>, vector<8x128xf32>, vector<8x128xf32>, vector<8x128xf32>, vector<8x128xf32>, vector<8x128xf32>, vector<8x128xf32>, vector<8x128xf32> -> vector<72x128xf32>
    %c0_50 = arith.constant 0 : index
    %c0_51 = arith.constant 0 : index
    %169 = vector.load %arg11[%c0_50, %c0_51] : memref<8x72xf32, #tpu.memory_space<vmem>>, vector<8x72xf32>
    %cst_52 = arith.constant dense<0.000000e+00> : vector<8x128xf32>
    %170 = tpu.matmul %169, %168, %cst_52 {dimension_numbers = #tpu.dot_dimension_numbers<[1], [0], [0], [1], [0, 0, 1, 1], [], []>} : vector<8x72xf32>, vector<72x128xf32>, vector<8x128xf32> -> vector<8x128xf32>
    %c0_53 = arith.constant 0 : index
    %c0_54 = arith.constant 0 : index
    %171 = vector.load %arg12[%c0_53, %c0_54] : memref<8x1xf32, #tpu.memory_space<vmem>>, vector<8x1xf32>
    %172 = vector.broadcast %171 : vector<8x1xf32> to vector<8x128xf32>
    %173 = arith.addf %170, %172 : vector<8x128xf32>
    %cst_55 = arith.constant 0.000000e+00 : f32
    %174 = vector.broadcast %cst_55 : f32 to vector<8x128xf32>
    %175 = arith.maximumf %173, %174 : vector<8x128xf32>
    %176 = tpu.concatenate %52, %93, %134, %175 in 0 : vector<8x128xf32>, vector<8x128xf32>, vector<8x128xf32>, vector<8x128xf32> -> vector<32x128xf32>
    %c0_56 = arith.constant 0 : index
    %c0_57 = arith.constant 0 : index
    %177 = vector.load %arg13[%c0_56, %c0_57] : memref<16x32xf32, #tpu.memory_space<vmem>>, vector<16x32xf32>
    %cst_58 = arith.constant dense<0.000000e+00> : vector<16x128xf32>
    %178 = tpu.matmul %177, %176, %cst_58 {dimension_numbers = #tpu.dot_dimension_numbers<[1], [0], [0], [1], [0, 0, 1, 1], [], []>} : vector<16x32xf32>, vector<32x128xf32>, vector<16x128xf32> -> vector<16x128xf32>
    %c0_59 = arith.constant 0 : index
    %c0_60 = arith.constant 0 : index
    %179 = vector.load %arg14[%c0_59, %c0_60] : memref<16x1xf32, #tpu.memory_space<vmem>>, vector<16x1xf32>
    %180 = vector.broadcast %179 : vector<16x1xf32> to vector<16x128xf32>
    %181 = arith.addf %178, %180 : vector<16x128xf32>
    %cst_61 = arith.constant 0.000000e+00 : f32
    %182 = vector.broadcast %cst_61 : f32 to vector<16x128xf32>
    %183 = arith.maximumf %181, %182 : vector<16x128xf32>
    %184 = arith.addf %183, %0 : vector<16x128xf32>
    %c9_i32_62 = arith.constant 9 : i32
    %185 = tpu.dynamic_rotate %184 by %c9_i32_62 dim 1 : vector<16x128xf32>, i32 -> vector<16x128xf32>
    %186 = vector.extract_strided_slice %1 {offsets = [0, 0], sizes = [1, 128], strides = [1, 1]} : vector<9x128xf32> to vector<1x128xf32>
    %187 = vector.broadcast %186 : vector<1x128xf32> to vector<16x128xf32>
    %188 = arith.mulf %185, %187 : vector<16x128xf32>
    %c8_i32_63 = arith.constant 8 : i32
    %189 = tpu.dynamic_rotate %184 by %c8_i32_63 dim 1 : vector<16x128xf32>, i32 -> vector<16x128xf32>
    %190 = vector.extract_strided_slice %1 {offsets = [1, 0], sizes = [1, 128], strides = [1, 1]} : vector<9x128xf32> to vector<1x128xf32>
    %191 = vector.broadcast %190 : vector<1x128xf32> to vector<16x128xf32>
    %192 = arith.mulf %189, %191 : vector<16x128xf32>
    %c7_i32_64 = arith.constant 7 : i32
    %193 = tpu.dynamic_rotate %184 by %c7_i32_64 dim 1 : vector<16x128xf32>, i32 -> vector<16x128xf32>
    %194 = vector.extract_strided_slice %1 {offsets = [2, 0], sizes = [1, 128], strides = [1, 1]} : vector<9x128xf32> to vector<1x128xf32>
    %195 = vector.broadcast %194 : vector<1x128xf32> to vector<16x128xf32>
    %196 = arith.mulf %193, %195 : vector<16x128xf32>
    %c1_i32_65 = arith.constant 1 : i32
    %197 = tpu.dynamic_rotate %184 by %c1_i32_65 dim 1 : vector<16x128xf32>, i32 -> vector<16x128xf32>
    %198 = vector.extract_strided_slice %1 {offsets = [3, 0], sizes = [1, 128], strides = [1, 1]} : vector<9x128xf32> to vector<1x128xf32>
    %199 = vector.broadcast %198 : vector<1x128xf32> to vector<16x128xf32>
    %200 = arith.mulf %197, %199 : vector<16x128xf32>
    %c127_i32_66 = arith.constant 127 : i32
    %201 = tpu.dynamic_rotate %184 by %c127_i32_66 dim 1 : vector<16x128xf32>, i32 -> vector<16x128xf32>
    %202 = vector.extract_strided_slice %1 {offsets = [5, 0], sizes = [1, 128], strides = [1, 1]} : vector<9x128xf32> to vector<1x128xf32>
    %203 = vector.broadcast %202 : vector<1x128xf32> to vector<16x128xf32>
    %204 = arith.mulf %201, %203 : vector<16x128xf32>
    %c121_i32_67 = arith.constant 121 : i32
    %205 = tpu.dynamic_rotate %184 by %c121_i32_67 dim 1 : vector<16x128xf32>, i32 -> vector<16x128xf32>
    %206 = vector.extract_strided_slice %1 {offsets = [6, 0], sizes = [1, 128], strides = [1, 1]} : vector<9x128xf32> to vector<1x128xf32>
    %207 = vector.broadcast %206 : vector<1x128xf32> to vector<16x128xf32>
    %208 = arith.mulf %205, %207 : vector<16x128xf32>
    %c120_i32_68 = arith.constant 120 : i32
    %209 = tpu.dynamic_rotate %184 by %c120_i32_68 dim 1 : vector<16x128xf32>, i32 -> vector<16x128xf32>
    %210 = vector.extract_strided_slice %1 {offsets = [7, 0], sizes = [1, 128], strides = [1, 1]} : vector<9x128xf32> to vector<1x128xf32>
    %211 = vector.broadcast %210 : vector<1x128xf32> to vector<16x128xf32>
    %212 = arith.mulf %209, %211 : vector<16x128xf32>
    %c119_i32_69 = arith.constant 119 : i32
    %213 = tpu.dynamic_rotate %184 by %c119_i32_69 dim 1 : vector<16x128xf32>, i32 -> vector<16x128xf32>
    %214 = vector.extract_strided_slice %1 {offsets = [8, 0], sizes = [1, 128], strides = [1, 1]} : vector<9x128xf32> to vector<1x128xf32>
    %215 = vector.broadcast %214 : vector<1x128xf32> to vector<16x128xf32>
    %216 = arith.mulf %213, %215 : vector<16x128xf32>
    %217 = tpu.concatenate %188, %192, %196, %200, %184, %204, %208, %212, %216 in 0 : vector<16x128xf32>, vector<16x128xf32>, vector<16x128xf32>, vector<16x128xf32>, vector<16x128xf32>, vector<16x128xf32>, vector<16x128xf32>, vector<16x128xf32>, vector<16x128xf32> -> vector<144x128xf32>
    %c0_70 = arith.constant 0 : index
    %c0_71 = arith.constant 0 : index
    %218 = vector.load %arg15[%c0_70, %c0_71] : memref<16x144xf32, #tpu.memory_space<vmem>>, vector<16x144xf32>
    %cst_72 = arith.constant dense<0.000000e+00> : vector<16x128xf32>
    %219 = tpu.matmul %218, %217, %cst_72 {dimension_numbers = #tpu.dot_dimension_numbers<[1], [0], [0], [1], [0, 0, 1, 1], [], []>} : vector<16x144xf32>, vector<144x128xf32>, vector<16x128xf32> -> vector<16x128xf32>
    %c0_73 = arith.constant 0 : index
    %c0_74 = arith.constant 0 : index
    %220 = vector.load %arg16[%c0_73, %c0_74] : memref<16x1xf32, #tpu.memory_space<vmem>>, vector<16x1xf32>
    %221 = vector.broadcast %220 : vector<16x1xf32> to vector<16x128xf32>
    %222 = arith.addf %219, %221 : vector<16x128xf32>
    %cst_75 = arith.constant 0.000000e+00 : f32
    %223 = vector.broadcast %cst_75 : f32 to vector<16x128xf32>
    %224 = arith.maximumf %222, %223 : vector<16x128xf32>
    %c0_76 = arith.constant 0 : index
    %c0_77 = arith.constant 0 : index
    %225 = vector.load %arg17[%c0_76, %c0_77] : memref<16x128xf32, #tpu.memory_space<vmem>>, vector<16x128xf32>
    tpu.vector_store %arg17[%c0_76, %c0_77], %224 {strides = array<i32>} : memref<16x128xf32, #tpu.memory_space<vmem>>, vector<16x128xf32>,
    return
  }
  func.func @transform_0(%arg0: i32) -> (i32, i32) {
    %c0_i32 = arith.constant 0 : i32
    %c0_i32_0 = arith.constant 0 : i32
    return %c0_i32, %arg0 : i32, i32
  }
  func.func @transform_1(%arg0: i32) -> (i32, i32) {
    %c0_i32 = arith.constant 0 : i32
    %c0_i32_0 = arith.constant 0 : i32
    %c0_i32_1 = arith.constant 0 : i32
    return %c0_i32, %c0_i32_0 : i32, i32
  }
  func.func @transform_2(%arg0: i32) -> (i32, i32) {
    %c0_i32 = arith.constant 0 : i32
    %c0_i32_0 = arith.constant 0 : i32
    %c0_i32_1 = arith.constant 0 : i32
    return %c0_i32, %c0_i32_0 : i32, i32
  }
  func.func @transform_3(%arg0: i32) -> (i32, i32) {
    %c0_i32 = arith.constant 0 : i32
    %c0_i32_0 = arith.constant 0 : i32
    %c0_i32_1 = arith.constant 0 : i32
    return %c0_i32, %c0_i32_0 : i32, i32
  }
  func.func @transform_4(%arg0: i32) -> (i32, i32) {
    %c0_i32 = arith.constant 0 : i32
    %c0_i32_0 = arith.constant 0 : i32
    %c0_i32_1 = arith.constant 0 : i32
    return %c0_i32, %c0_i32_0 : i32, i32
  }
  func.func @transform_5(%arg0: i32) -> (i32, i32) {
    %c0_i32 = arith.constant 0 : i32
    %c0_i32_0 = arith.constant 0 : i32
    %c0_i32_1 = arith.constant 0 : i32
    return %c0_i32, %c0_i32_0 : i32, i32
  }
  func.func @transform_6(%arg0: i32) -> (i32, i32) {
    %c0_i32 = arith.constant 0 : i32
    %c0_i32_0 = arith.constant 0 : i32
    %c0_i32_1 = arith.constant 0 : i32
    return %c0_i32, %c0_i32_0 : i32, i32
  }
  func.func @transform_7(%arg0: i32) -> (i32, i32) {
    %c0_i32 = arith.constant 0 : i32
    %c0_i32_0 = arith.constant 0 : i32
    %c0_i32_1 = arith.constant 0 : i32
    return %c0_i32, %c0_i32_0 : i32, i32
  }
  func.func @transform_8(%arg0: i32) -> (i32, i32) {
    %c0_i32 = arith.constant 0 : i32
    %c0_i32_0 = arith.constant 0 : i32
    %c0_i32_1 = arith.constant 0 : i32
    return %c0_i32, %c0_i32_0 : i32, i32
  }
  func.func @transform_9(%arg0: i32) -> (i32, i32) {
    %c0_i32 = arith.constant 0 : i32
    %c0_i32_0 = arith.constant 0 : i32
    %c0_i32_1 = arith.constant 0 : i32
    return %c0_i32, %c0_i32_0 : i32, i32
  }
  func.func @transform_10(%arg0: i32) -> (i32, i32) {
    %c0_i32 = arith.constant 0 : i32
    %c0_i32_0 = arith.constant 0 : i32
    %c0_i32_1 = arith.constant 0 : i32
    return %c0_i32, %c0_i32_0 : i32, i32
  }
  func.func @transform_11(%arg0: i32) -> (i32, i32) {
    %c0_i32 = arith.constant 0 : i32
    %c0_i32_0 = arith.constant 0 : i32
    %c0_i32_1 = arith.constant 0 : i32
    return %c0_i32, %c0_i32_0 : i32, i32
  }
  func.func @transform_12(%arg0: i32) -> (i32, i32) {
    %c0_i32 = arith.constant 0 : i32
    %c0_i32_0 = arith.constant 0 : i32
    %c0_i32_1 = arith.constant 0 : i32
    return %c0_i32, %c0_i32_0 : i32, i32
  }
  func.func @transform_13(%arg0: i32) -> (i32, i32) {
    %c0_i32 = arith.constant 0 : i32
    %c0_i32_0 = arith.constant 0 : i32
    %c0_i32_1 = arith.constant 0 : i32
    return %c0_i32, %c0_i32_0 : i32, i32
  }
  func.func @transform_14(%arg0: i32) -> (i32, i32) {
    %c0_i32 = arith.constant 0 : i32
    %c0_i32_0 = arith.constant 0 : i32
    %c0_i32_1 = arith.constant 0 : i32
    return %c0_i32, %c0_i32_0 : i32, i32
  }
  func.func @transform_15(%arg0: i32) -> (i32, i32) {
    %c0_i32 = arith.constant 0 : i32
    %c0_i32_0 = arith.constant 0 : i32
    %c0_i32_1 = arith.constant 0 : i32
    return %c0_i32, %c0_i32_0 : i32, i32
  }
  func.func @transform_16(%arg0: i32) -> (i32, i32) {
    %c0_i32 = arith.constant 0 : i32
    %c0_i32_0 = arith.constant 0 : i32
    return %c0_i32, %arg0 : i32, i32
  }
}

</mosaic_0001>

<llo_original>
// kernel: res2net_forward_pallas.1
$region0: #{res2net_forward_pallas.1}
  #allocation0 [shape = 'u32[]', space=smem, size = 0x4, offset = 0x4, fixed_abs, tag = 'smem constant byte address 0x4 - core index']
  #allocation1 [shape = 'u32[72,128]{1,0:T(1,128)}', space=vmem, size = 0x9000, scoped, tag = 'internal scratch']
  %s0 = inlined_call_operand.vmem [shape: f32[16,256], index: 0, kind: input, shape index: {}]
  %s1 = inlined_call_operand.vmem [shape: f32[9,128], index: 1, kind: input, shape index: {}]
  %s2 = inlined_call_operand.vmem [shape: f32[32,16], index: 2, kind: input, shape index: {}]
  %s3 = inlined_call_operand.vmem [shape: f32[32,1], index: 3, kind: input, shape index: {}]
  %s4 = inlined_call_operand.vmem [shape: f32[8,72], index: 4, kind: input, shape index: {}]
  %s5 = inlined_call_operand.vmem [shape: f32[8,1], index: 5, kind: input, shape index: {}]
  %s6 = inlined_call_operand.vmem [shape: f32[8,72], index: 6, kind: input, shape index: {}]
  %s7 = inlined_call_operand.vmem [shape: f32[8,1], index: 7, kind: input, shape index: {}]
  %s8 = inlined_call_operand.vmem [shape: f32[8,72], index: 8, kind: input, shape index: {}]
  %s9 = inlined_call_operand.vmem [shape: f32[8,1], index: 9, kind: input, shape index: {}]
  %s10 = inlined_call_operand.vmem [shape: f32[8,72], index: 10, kind: input, shape index: {}]
  %s11 = inlined_call_operand.vmem [shape: f32[8,1], index: 11, kind: input, shape index: {}]
  %s12 = inlined_call_operand.vmem [shape: f32[16,32], index: 12, kind: input, shape index: {}]
  %s13 = inlined_call_operand.vmem [shape: f32[16,1], index: 13, kind: input, shape index: {}]
  %s14 = inlined_call_operand.vmem [shape: f32[16,144], index: 14, kind: input, shape index: {}]
  %s15 = inlined_call_operand.vmem [shape: f32[16,1], index: 15, kind: input, shape index: {}]
  %s16 = inlined_call_operand.vmem [shape: f32[16,256], index: 16, kind: output, shape index: {}]
  %s17 = sld [smem:[#allocation0]]
  $region169: #{res2net_forward_pallas.1} parent=0
    _
  %s19 = ssub.s32 1, %s17
  %s20 = scalar_select 0, %s19, %s17
  $region1: #{res2net_forward_pallas.1} parent=0
    #allocation2 [shape = 'u8[16384]{0}', space=vmem, size = 0x4000, scoped, tag = 'input window, operand 0']
    #allocation3 [shape = 'u8[16384]{0}', space=vmem, size = 0x4000, scoped, tag = 'output window, operand 0']
    loop: start=0, step=1, limit=4
    $region2: #{res2net_forward_pallas.1} parent=1 // loop_pre_header
      _
    $region3: #{res2net_forward_pallas.1} parent=1 // loop_header
      %s22 = sphi 0, %s26
      %p23 = scmp.ge.s32.totalorder %s22, 4
      %s32 = sphi 0, %s34
      %s35 = sphi 0, %s32
      %s36 = sphi 0, %s35
      %s52 = sphi 0, %s36
      %s56 = sphi 0, %s56
      %s58 = sphi 0, %s56
      %s59 = sphi 0, %s58
      %s73 = sphi 0, %s59
      %s77 = sphi 0, %s77
      %s79 = sphi 0, %s77
      %s80 = sphi 0, %s79
      %s94 = sphi 0, %s80
      %s98 = sphi 0, %s98
      %s100 = sphi 0, %s98
      %s101 = sphi 0, %s100
      %s115 = sphi 0, %s101
      %s119 = sphi 0, %s119
      %s121 = sphi 0, %s119
      %s122 = sphi 0, %s121
      %s136 = sphi 0, %s122
      %s140 = sphi 0, %s140
      %s142 = sphi 0, %s140
      %s143 = sphi 0, %s142
      %s157 = sphi 0, %s143
      %s161 = sphi 0, %s161
      %s163 = sphi 0, %s161
      %s164 = sphi 0, %s163
      %s178 = sphi 0, %s164
      %s182 = sphi 0, %s182
      %s184 = sphi 0, %s182
      %s185 = sphi 0, %s184
      %s199 = sphi 0, %s185
      %s203 = sphi 0, %s203
      %s205 = sphi 0, %s203
      %s206 = sphi 0, %s205
      %s220 = sphi 0, %s206
      %s224 = sphi 0, %s224
      %s226 = sphi 0, %s224
      %s227 = sphi 0, %s226
      %s241 = sphi 0, %s227
      %s245 = sphi 0, %s245
      %s247 = sphi 0, %s245
      %s248 = sphi 0, %s247
      %s262 = sphi 0, %s248
      %s266 = sphi 0, %s266
      %s268 = sphi 0, %s266
      %s269 = sphi 0, %s268
      %s283 = sphi 0, %s269
      %s287 = sphi 0, %s287
      %s289 = sphi 0, %s287
      %s290 = sphi 0, %s289
      %s304 = sphi 0, %s290
      %s308 = sphi 0, %s308
      %s310 = sphi 0, %s308
      %s311 = sphi 0, %s310
      %s325 = sphi 0, %s311
      %s329 = sphi 0, %s329
      %s331 = sphi 0, %s329
      %s332 = sphi 0, %s331
      %s346 = sphi 0, %s332
      %s350 = sphi 0, %s350
      %s352 = sphi 0, %s350
      %s353 = sphi 0, %s352
      %s367 = sphi 0, %s353
      %s373 = sphi 0, %s375
      %s376 = sphi 0, %s373
      %s377 = sphi 0, %s376
      %s393 = sphi 0, %s377
    $region4: #{res2net_forward_pallas.1} parent=1 // loop_header_branch
      %25 = sbr.rel (%p23) target = $region8
    $region5: #{res2net_forward_pallas.1} parent=1 // loop_body
      %s27 = ssub.s32 %s22, 1
      %s28 = ssub.s32 %s22, 2
      %s29 = sadd.s32 %s22, 1
      %s30 = ssub.s32 %s22, %s29
      %p31 = scmp.eq.s32.totalorder %s30, 0
      %s33 = sadd.s32 %s32, 1
      %s34 = scalar_select %p31, %s32, %s33
      %p37 = pneg %p31
      %p38 = scmp.eq.s32.totalorder %s22, 1
      %p39 = por %p37, %p38
      %p40 = scmp.ne.s32.totalorder %s32, %s35
      %p41 = scmp.eq.s32.totalorder %s22, 0
      %p42 = por %p40, %p41
      %p43 = scmp.ne.s32.totalorder %s32, %s35
      %p44 = scmp.eq.s32.totalorder %s27, 1
      %p45 = por %p43, %p44
      %p46 = scmp.ne.s32.totalorder %s35, %s36
      %p47 = scmp.eq.s32.totalorder %s27, 0
      %p48 = por %p46, %p47
      %p49 = scmp.ne.s32.totalorder %s35, %s36
      %p50 = scmp.eq.s32.totalorder %s28, 1
      %p51 = por %p49, %p50
      %p53 = scmp.ne.s32.totalorder %s36, %s52
      %p54 = scmp.eq.s32.totalorder %s28, 0
      %p55 = por %p53, %p54
      %s57 = sadd.s32 %s56, 1
      %p60 = scmp.eq.s32.totalorder %s22, 1
      %p61 = scmp.ne.s32.totalorder %s56, %s58
      %p62 = scmp.eq.s32.totalorder %s22, 0
      %p63 = por %p61, %p62
      %p64 = scmp.ne.s32.totalorder %s56, %s58
      %p65 = scmp.eq.s32.totalorder %s27, 1
      %p66 = por %p64, %p65
      %p67 = scmp.ne.s32.totalorder %s58, %s59
      %p68 = scmp.eq.s32.totalorder %s27, 0
      %p69 = por %p67, %p68
      %p70 = scmp.ne.s32.totalorder %s58, %s59
      %p71 = scmp.eq.s32.totalorder %s28, 1
      %p72 = por %p70, %p71
      %p74 = scmp.ne.s32.totalorder %s59, %s73
      %p75 = scmp.eq.s32.totalorder %s28, 0
      %p76 = por %p74, %p75
      %s78 = sadd.s32 %s77, 1
      %p81 = scmp.eq.s32.totalorder %s22, 1
      %p82 = scmp.ne.s32.totalorder %s77, %s79
      %p83 = scmp.eq.s32.totalorder %s22, 0
      %p84 = por %p82, %p83
      %p85 = scmp.ne.s32.totalorder %s77, %s79
      %p86 = scmp.eq.s32.totalorder %s27, 1
      %p87 = por %p85, %p86
      %p88 = scmp.ne.s32.totalorder %s79, %s80
      %p89 = scmp.eq.s32.totalorder %s27, 0
      %p90 = por %p88, %p89
      %p91 = scmp.ne.s32.totalorder %s79, %s80
      %p92 = scmp.eq.s32.totalorder %s28, 1
      %p93 = por %p91, %p92
      %p95 = scmp.ne.s32.totalorder %s80, %s94
      %p96 = scmp.eq.s32.totalorder %s28, 0
      %p97 = por %p95, %p96
      %s99 = sadd.s32 %s98, 1
      %p102 = scmp.eq.s32.totalorder %s22, 1
      %p103 = scmp.ne.s32.totalorder %s98, %s100
      %p104 = scmp.eq.s32.totalorder %s22, 0
      %p105 = por %p103, %p104
      %p106 = scmp.ne.s32.totalorder %s98, %s100
      %p107 = scmp.eq.s32.totalorder %s27, 1
      %p108 = por %p106, %p107
      %p109 = scmp.ne.s32.totalorder %s100, %s101
      %p110 = scmp.eq.s32.totalorder %s27, 0
      %p111 = por %p109, %p110
      %p112 = scmp.ne.s32.totalorder %s100, %s101
      %p113 = scmp.eq.s32.totalorder %s28, 1
      %p114 = por %p112, %p113
      %p116 = scmp.ne.s32.totalorder %s101, %s115
      %p117 = scmp.eq.s32.totalorder %s28, 0
      %p118 = por %p116, %p117
      %s120 = sadd.s32 %s119, 1
      %p123 = scmp.eq.s32.totalorder %s22, 1
      %p124 = scmp.ne.s32.totalorder %s119, %s121
      %p125 = scmp.eq.s32.totalorder %s22, 0
      %p126 = por %p124, %p125
      %p127 = scmp.ne.s32.totalorder %s119, %s121
      %p128 = scmp.eq.s32.totalorder %s27, 1
      %p129 = por %p127, %p128
      %p130 = scmp.ne.s32.totalorder %s121, %s122
      %p131 = scmp.eq.s32.totalorder %s27, 0
      %p132 = por %p130, %p131
      %p133 = scmp.ne.s32.totalorder %s121, %s122
      %p134 = scmp.eq.s32.totalorder %s28, 1
      %p135 = por %p133, %p134
      %p137 = scmp.ne.s32.totalorder %s122, %s136
      %p138 = scmp.eq.s32.totalorder %s28, 0
      %p139 = por %p137, %p138
      %s141 = sadd.s32 %s140, 1
      %p144 = scmp.eq.s32.totalorder %s22, 1
      %p145 = scmp.ne.s32.totalorder %s140, %s142
      %p146 = scmp.eq.s32.totalorder %s22, 0
      %p147 = por %p145, %p146
      %p148 = scmp.ne.s32.totalorder %s140, %s142
      %p149 = scmp.eq.s32.totalorder %s27, 1
      %p150 = por %p148, %p149
      %p151 = scmp.ne.s32.totalorder %s142, %s143
      %p152 = scmp.eq.s32.totalorder %s27, 0
      %p153 = por %p151, %p152
      %p154 = scmp.ne.s32.totalorder %s142, %s143
      %p155 = scmp.eq.s32.totalorder %s28, 1
      %p156 = por %p154, %p155
      %p158 = scmp.ne.s32.totalorder %s143, %s157
      %p159 = scmp.eq.s32.totalorder %s28, 0
      %p160 = por %p158, %p159
      %s162 = sadd.s32 %s161, 1
      %p165 = scmp.eq.s32.totalorder %s22, 1
      %p166 = scmp.ne.s32.totalorder %s161, %s163
      %p167 = scmp.eq.s32.totalorder %s22, 0
      %p168 = por %p166, %p167
      %p169 = scmp.ne.s32.totalorder %s161, %s163
      %p170 = scmp.eq.s32.totalorder %s27, 1
      %p171 = por %p169, %p170
      %p172 = scmp.ne.s32.totalorder %s163, %s164
      %p173 = scmp.eq.s32.totalorder %s27, 0
      %p174 = por %p172, %p173
      %p175 = scmp.ne.s32.totalorder %s163, %s164
      %p176 = scmp.eq.s32.totalorder %s28, 1
      %p177 = por %p175, %p176
      %p179 = scmp.ne.s32.totalorder %s164, %s178
      %p180 = scmp.eq.s32.totalorder %s28, 0
      %p181 = por %p179, %p180
      %s183 = sadd.s32 %s182, 1
      %p186 = scmp.eq.s32.totalorder %s22, 1
      %p187 = scmp.ne.s32.totalorder %s182, %s184
      %p188 = scmp.eq.s32.totalorder %s22, 0
      %p189 = por %p187, %p188
      %p190 = scmp.ne.s32.totalorder %s182, %s184
      %p191 = scmp.eq.s32.totalorder %s27, 1
      %p192 = por %p190, %p191
      %p193 = scmp.ne.s32.totalorder %s184, %s185
      %p194 = scmp.eq.s32.totalorder %s27, 0
      %p195 = por %p193, %p194
      %p196 = scmp.ne.s32.totalorder %s184, %s185
      %p197 = scmp.eq.s32.totalorder %s28, 1
      %p198 = por %p196, %p197
      %p200 = scmp.ne.s32.totalorder %s185, %s199
      %p201 = scmp.eq.s32.totalorder %s28, 0
      %p202 = por %p200, %p201
      %s204 = sadd.s32 %s203, 1
      %p207 = scmp.eq.s32.totalorder %s22, 1
      %p208 = scmp.ne.s32.totalorder %s203, %s205
      %p209 = scmp.eq.s32.totalorder %s22, 0
      %p210 = por %p208, %p209
      %p211 = scmp.ne.s32.totalorder %s203, %s205
      %p212 = scmp.eq.s32.totalorder %s27, 1
      %p213 = por %p211, %p212
      %p214 = scmp.ne.s32.totalorder %s205, %s206
      %p215 = scmp.eq.s32.totalorder %s27, 0
      %p216 = por %p214, %p215
      %p217 = scmp.ne.s32.totalorder %s205, %s206
      %p218 = scmp.eq.s32.totalorder %s28, 1
      %p219 = por %p217, %p218
      %p221 = scmp.ne.s32.totalorder %s206, %s220
      %p222 = scmp.eq.s32.totalorder %s28, 0
      %p223 = por %p221, %p222
      %s225 = sadd.s32 %s224, 1
      %p228 = scmp.eq.s32.totalorder %s22, 1
      %p229 = scmp.ne.s32.totalorder %s224, %s226
      %p230 = scmp.eq.s32.totalorder %s22, 0
      %p231 = por %p229, %p230
      %p232 = scmp.ne.s32.totalorder %s224, %s226
      %p233 = scmp.eq.s32.totalorder %s27, 1
      %p234 = por %p232, %p233
      %p235 = scmp.ne.s32.totalorder %s226, %s227
      %p236 = scmp.eq.s32.totalorder %s27, 0
      %p237 = por %p235, %p236
      %p238 = scmp.ne.s32.totalorder %s226, %s227
      %p239 = scmp.eq.s32.totalorder %s28, 1
      %p240 = por %p238, %p239
      %p242 = scmp.ne.s32.totalorder %s227, %s241
      %p243 = scmp.eq.s32.totalorder %s28, 0
      %p244 = por %p242, %p243
      %s246 = sadd.s32 %s245, 1
      %p249 = scmp.eq.s32.totalorder %s22, 1
      %p250 = scmp.ne.s32.totalorder %s245, %s247
      %p251 = scmp.eq.s32.totalorder %s22, 0
      %p252 = por %p250, %p251
      %p253 = scmp.ne.s32.totalorder %s245, %s247
      %p254 = scmp.eq.s32.totalorder %s27, 1
      %p255 = por %p253, %p254
      %p256 = scmp.ne.s32.totalorder %s247, %s248
      %p257 = scmp.eq.s32.totalorder %s27, 0
      %p258 = por %p256, %p257
      %p259 = scmp.ne.s32.totalorder %s247, %s248
      %p260 = scmp.eq.s32.totalorder %s28, 1
      %p261 = por %p259, %p260
      %p263 = scmp.ne.s32.totalorder %s248, %s262
      %p264 = scmp.eq.s32.totalorder %s28, 0
      %p265 = por %p263, %p264
      %s267 = sadd.s32 %s266, 1
      %p270 = scmp.eq.s32.totalorder %s22, 1
      %p271 = scmp.ne.s32.totalorder %s266, %s268
      %p272 = scmp.eq.s32.totalorder %s22, 0
      %p273 = por %p271, %p272
      %p274 = scmp.ne.s32.totalorder %s266, %s268
      %p275 = scmp.eq.s32.totalorder %s27, 1
      %p276 = por %p274, %p275
      %p277 = scmp.ne.s32.totalorder %s268, %s269
      %p278 = scmp.eq.s32.totalorder %s27, 0
      %p279 = por %p277, %p278
      %p280 = scmp.ne.s32.totalorder %s268, %s269
      %p281 = scmp.eq.s32.totalorder %s28, 1
      %p282 = por %p280, %p281
      %p284 = scmp.ne.s32.totalorder %s269, %s283
      %p285 = scmp.eq.s32.totalorder %s28, 0
      %p286 = por %p284, %p285
      %s288 = sadd.s32 %s287, 1
      %p291 = scmp.eq.s32.totalorder %s22, 1
      %p292 = scmp.ne.s32.totalorder %s287, %s289
      %p293 = scmp.eq.s32.totalorder %s22, 0
      %p294 = por %p292, %p293
      %p295 = scmp.ne.s32.totalorder %s287, %s289
      %p296 = scmp.eq.s32.totalorder %s27, 1
      %p297 = por %p295, %p296
      %p298 = scmp.ne.s32.totalorder %s289, %s290
      %p299 = scmp.eq.s32.totalorder %s27, 0
      %p300 = por %p298, %p299
      %p301 = scmp.ne.s32.totalorder %s289, %s290
      %p302 = scmp.eq.s32.totalorder %s28, 1
      %p303 = por %p301, %p302
      %p305 = scmp.ne.s32.totalorder %s290, %s304
      %p306 = scmp.eq.s32.totalorder %s28, 0
      %p307 = por %p305, %p306
      %s309 = sadd.s32 %s308, 1
      %p312 = scmp.eq.s32.totalorder %s22, 1
      %p313 = scmp.ne.s32.totalorder %s308, %s310
      %p314 = scmp.eq.s32.totalorder %s22, 0
      %p315 = por %p313, %p314
      %p316 = scmp.ne.s32.totalorder %s308, %s310
      %p317 = scmp.eq.s32.totalorder %s27, 1
      %p318 = por %p316, %p317
      %p319 = scmp.ne.s32.totalorder %s310, %s311
      %p320 = scmp.eq.s32.totalorder %s27, 0
      %p321 = por %p319, %p320
      %p322 = scmp.ne.s32.totalorder %s310, %s311
      %p323 = scmp.eq.s32.totalorder %s28, 1
      %p324 = por %p322, %p323
      %p326 = scmp.ne.s32.totalorder %s311, %s325
      %p327 = scmp.eq.s32.totalorder %s28, 0
      %p328 = por %p326, %p327
      %s330 = sadd.s32 %s329, 1
      %p333 = scmp.eq.s32.totalorder %s22, 1
      %p334 = scmp.ne.s32.totalorder %s329, %s331
      %p335 = scmp.eq.s32.totalorder %s22, 0
      %p336 = por %p334, %p335
      %p337 = scmp.ne.s32.totalorder %s329, %s331
      %p338 = scmp.eq.s32.totalorder %s27, 1
      %p339 = por %p337, %p338
      %p340 = scmp.ne.s32.totalorder %s331, %s332
      %p341 = scmp.eq.s32.totalorder %s27, 0
      %p342 = por %p340, %p341
      %p343 = scmp.ne.s32.totalorder %s331, %s332
      %p344 = scmp.eq.s32.totalorder %s28, 1
      %p345 = por %p343, %p344
      %p347 = scmp.ne.s32.totalorder %s332, %s346
      %p348 = scmp.eq.s32.totalorder %s28, 0
      %p349 = por %p347, %p348
      %s351 = sadd.s32 %s350, 1
      %p354 = scmp.eq.s32.totalorder %s22, 1
      %p355 = scmp.ne.s32.totalorder %s350, %s352
      %p356 = scmp.eq.s32.totalorder %s22, 0
      %p357 = por %p355, %p356
      %p358 = scmp.ne.s32.totalorder %s350, %s352
      %p359 = scmp.eq.s32.totalorder %s27, 1
      %p360 = por %p358, %p359
      %p361 = scmp.ne.s32.totalorder %s352, %s353
      %p362 = scmp.eq.s32.totalorder %s27, 0
      %p363 = por %p361, %p362
      %p364 = scmp.ne.s32.totalorder %s352, %s353
      %p365 = scmp.eq.s32.totalorder %s28, 1
      %p366 = por %p364, %p365
      %p368 = scmp.ne.s32.totalorder %s353, %s367
      %p369 = scmp.eq.s32.totalorder %s28, 0
      %p370 = por %p368, %p369
      %s371 = ssub.s32 %s22, %s29
      %p372 = scmp.eq.s32.totalorder %s371, 0
      %s374 = sadd.s32 %s373, 1
      %s375 = scalar_select %p372, %s373, %s374
      %p378 = pneg %p372
      %p379 = scmp.eq.s32.totalorder %s22, 1
      %p380 = por %p378, %p379
      %p381 = scmp.ne.s32.totalorder %s373, %s376
      %p382 = scmp.eq.s32.totalorder %s22, 0
      %p383 = por %p381, %p382
      %p384 = scmp.ne.s32.totalorder %s373, %s376
      %p385 = scmp.eq.s32.totalorder %s27, 1
      %p386 = por %p384, %p385
      %p387 = scmp.ne.s32.totalorder %s376, %s377
      %p388 = scmp.eq.s32.totalorder %s27, 0
      %p389 = por %p387, %p388
      %p390 = scmp.ne.s32.totalorder %s376, %s377
      %p391 = scmp.eq.s32.totalorder %s28, 1
      %p392 = por %p390, %p391
      %p394 = scmp.ne.s32.totalorder %s377, %s393
      %p395 = scmp.eq.s32.totalorder %s28, 0
      %p396 = por %p394, %p395
      %p397 = scmp.le.s32.totalorder 1, %s22
      %p398 = scmp.lt.s32.totalorder %s22, 3
      %p399 = pnand %p397, %p398
      %p400 = pneg %p399
      // Predicated region
      $region9: #{res2net_forward_pallas.1} parent=5 // pred_check
        _
      $region10: #{res2net_forward_pallas.1} parent=5 // pred_check_branch
        %402 = sbr.rel (%p399) target = $region12
      $region11: #{res2net_forward_pallas.1} parent=5 // pred_region
        %s403 = ssub.s32 %s22, 1
        // Predicated region
        $region13: #{res2net_forward_pallas.1} parent=11 // pred_check
          %p404 = pneg %p69
        $region14: #{res2net_forward_pallas.1} parent=11 // pred_check_branch
          %406 = sbr.rel (%p404) target = $region16
        $region15: #{res2net_forward_pallas.1} parent=11 // pred_region
          _
        $region16: #{res2net_forward_pallas.1} parent=11 // pred_fallthru
          _
        // Predicated region
        $region17: #{res2net_forward_pallas.1} parent=11 // pred_check
          %p407 = pneg %p90
        $region18: #{res2net_forward_pallas.1} parent=11 // pred_check_branch
          %409 = sbr.rel (%p407) target = $region20
        $region19: #{res2net_forward_pallas.1} parent=11 // pred_region
          _
        $region20: #{res2net_forward_pallas.1} parent=11 // pred_fallthru
          _
        // Predicated region
        $region21: #{res2net_forward_pallas.1} parent=11 // pred_check
          %p410 = pneg %p111
        $region22: #{res2net_forward_pallas.1} parent=11 // pred_check_branch
          %412 = sbr.rel (%p410) target = $region24
        $region23: #{res2net_forward_pallas.1} parent=11 // pred_region
          _
        $region24: #{res2net_forward_pallas.1} parent=11 // pred_fallthru
          _
        // Predicated region
        $region25: #{res2net_forward_pallas.1} parent=11 // pred_check
          %p413 = pneg %p132
        $region26: #{res2net_forward_pallas.1} parent=11 // pred_check_branch
          %415 = sbr.rel (%p413) target = $region28
        $region27: #{res2net_forward_pallas.1} parent=11 // pred_region
          _
        $region28: #{res2net_forward_pallas.1} parent=11 // pred_fallthru
          _
        // Predicated region
        $region29: #{res2net_forward_pallas.1} parent=11 // pred_check
          %p416 = pneg %p153
        $region30: #{res2net_forward_pallas.1} parent=11 // pred_check_branch
          %418 = sbr.rel (%p416) target = $region32
        $region31: #{res2net_forward_pallas.1} parent=11 // pred_region
          _
        $region32: #{res2net_forward_pallas.1} parent=11 // pred_fallthru
          _
        // Predicated region
        $region33: #{res2net_forward_pallas.1} parent=11 // pred_check
          %p419 = pneg %p174
        $region34: #{res2net_forward_pallas.1} parent=11 // pred_check_branch
          %421 = sbr.rel (%p419) target = $region36
        $region35: #{res2net_forward_pallas.1} parent=11 // pred_region
          _
        $region36: #{res2net_forward_pallas.1} parent=11 // pred_fallthru
          _
        // Predicated region
        $region37: #{res2net_forward_pallas.1} parent=11 // pred_check
          %p422 = pneg %p195
        $region38: #{res2net_forward_pallas.1} parent=11 // pred_check_branch
          %424 = sbr.rel (%p422) target = $region40
        $region39: #{res2net_forward_pallas.1} parent=11 // pred_region
          _
        $region40: #{res2net_forward_pallas.1} parent=11 // pred_fallthru
          _
        // Predicated region
        $region41: #{res2net_forward_pallas.1} parent=11 // pred_check
          %p425 = pneg %p216
        $region42: #{res2net_forward_pallas.1} parent=11 // pred_check_branch
          %427 = sbr.rel (%p425) target = $region44
        $region43: #{res2net_forward_pallas.1} parent=11 // pred_region
          _
        $region44: #{res2net_forward_pallas.1} parent=11 // pred_fallthru
          _
        // Predicated region
        $region45: #{res2net_forward_pallas.1} parent=11 // pred_check
          %p428 = pneg %p237
        $region46: #{res2net_forward_pallas.1} parent=11 // pred_check_branch
          %430 = sbr.rel (%p428) target = $region48
        $region47: #{res2net_forward_pallas.1} parent=11 // pred_region
          _
        $region48: #{res2net_forward_pallas.1} parent=11 // pred_fallthru
          _
        // Predicated region
        $region49: #{res2net_forward_pallas.1} parent=11 // pred_check
          %p431 = pneg %p258
        $region50: #{res2net_forward_pallas.1} parent=11 // pred_check_branch
          %433 = sbr.rel (%p431) target = $region52
        $region51: #{res2net_forward_pallas.1} parent=11 // pred_region
          _
        $region52: #{res2net_forward_pallas.1} parent=11 // pred_fallthru
          _
        // Predicated region
        $region53: #{res2net_forward_pallas.1} parent=11 // pred_check
          %p434 = pneg %p279
        $region54: #{res2net_forward_pallas.1} parent=11 // pred_check_branch
          %436 = sbr.rel (%p434) target = $region56
        $region55: #{res2net_forward_pallas.1} parent=11 // pred_region
          _
        $region56: #{res2net_forward_pallas.1} parent=11 // pred_fallthru
          _
        // Predicated region
        $region57: #{res2net_forward_pallas.1} parent=11 // pred_check
          %p437 = pneg %p300
        $region58: #{res2net_forward_pallas.1} parent=11 // pred_check_branch
          %439 = sbr.rel (%p437) target = $region60
        $region59: #{res2net_forward_pallas.1} parent=11 // pred_region
          _
        $region60: #{res2net_forward_pallas.1} parent=11 // pred_fallthru
          _
        // Predicated region
        $region61: #{res2net_forward_pallas.1} parent=11 // pred_check
          %p440 = pneg %p321
        $region62: #{res2net_forward_pallas.1} parent=11 // pred_check_branch
          %442 = sbr.rel (%p440) target = $region64
        $region63: #{res2net_forward_pallas.1} parent=11 // pred_region
          _
        $region64: #{res2net_forward_pallas.1} parent=11 // pred_fallthru
          _
        // Predicated region
        $region65: #{res2net_forward_pallas.1} parent=11 // pred_check
          %p443 = pneg %p342
        $region66: #{res2net_forward_pallas.1} parent=11 // pred_check_branch
          %445 = sbr.rel (%p443) target = $region68
        $region67: #{res2net_forward_pallas.1} parent=11 // pred_region
          _
        $region68: #{res2net_forward_pallas.1} parent=11 // pred_fallthru
          _
        // Predicated region
        $region69: #{res2net_forward_pallas.1} parent=11 // pred_check
          %p446 = pneg %p363
        $region70: #{res2net_forward_pallas.1} parent=11 // pred_check_branch
          %448 = sbr.rel (%p446) target = $region72
        $region71: #{res2net_forward_pallas.1} parent=11 // pred_region
          _
        $region72: #{res2net_forward_pallas.1} parent=11 // pred_fallthru
          _
      $region12: #{res2net_forward_pallas.1} parent=5 // pred_fallthru
        _
      %p449 = scmp.lt.s32.totalorder %s22, 2
      // Predicated region
      $region73: #{res2net_forward_pallas.1} parent=5 // pred_check
        %p450 = pneg %p449
      $region74: #{res2net_forward_pallas.1} parent=5 // pred_check_branch
        %452 = sbr.rel (%p450) target = $region76
      $region75: #{res2net_forward_pallas.1} parent=5 // pred_region
        // Predicated region
        $region77: #{res2net_forward_pallas.1} parent=75 // pred_check
          %p453 = pneg %p42
        $region78: #{res2net_forward_pallas.1} parent=75 // pred_check_branch
          %455 = sbr.rel (%p453) target = $region80
        $region79: #{res2net_forward_pallas.1} parent=75 // pred_region
          %s456 = sand.u32 %s32, 1
          %s457 = sand.u32 %s32, 1
          %s458 = smul.addr %s457, 16
          %s459 = scalar_lea.vmem [#allocation2], %s458
          %s460 = smul.addr %s22, 8
          %s461 = scalar_lea.vmem %s0, %s460
          // Predicated region
          $region81: #{res2net_forward_pallas.1} parent=79 // pred_check
            _
          $region82: #{res2net_forward_pallas.1} parent=79 // pred_check_branch
            %463 = sbr.rel (0) target = $region84
          $region83: #{res2net_forward_pallas.1} parent=79 // pred_region
            // Predicated region
            $region85: #{res2net_forward_pallas.1} parent=83 // pred_check
              _
            $region86: #{res2net_forward_pallas.1} parent=83 // pred_check_branch
              %465 = sbr.rel (0) target = $region88
            $region87: #{res2net_forward_pallas.1} parent=83 // pred_region
              // Predicated region
              $region100: #{res2net_forward_pallas.1} parent=87 // pred_check
                _
              $region101: #{res2net_forward_pallas.1} parent=87 // pred_check_branch
                %483 = sbr.rel (0) target = $region103
              $region102: #{res2net_forward_pallas.1} parent=87 // pred_region
                loop: start=0, step=1, limit=1
                $region104: #{res2net_forward_pallas.1} parent=102 // loop_pre_header
                  _
                $region105: #{res2net_forward_pallas.1} parent=102 // loop_header
                  %s485 = sphi 0, %s489
                  %p486 = scmp.ge.s32.totalorder %s485, 1
                  %s490 = sphi %s461, %s461
                  %s491 = sphi %s459, %s459
                $region106: #{res2net_forward_pallas.1} parent=102 // loop_header_branch
                  %488 = sbr.rel (%p486) target = $region110
                $region107: #{res2net_forward_pallas.1} parent=102 // loop_body
                  %v492 = vld [vmem:[%s490] sm:$0xff]
                  %493 = vst [vmem:[%s491] sm:$0xff] %v492
                  %v494 = vld [vmem:[%s490 + $0x10] sm:$0xff]
                  %495 = vst [vmem:[%s491 + $0x8] sm:$0xff] %v494
                $region108: #{res2net_forward_pallas.1} parent=102 // loop_footer
                  %s489 = sadd.s32 1, %s485
                $region109: #{res2net_forward_pallas.1} parent=102 // loop_footer_branch
                  %484 = sbr.rel target = $region105
                $region110: #{res2net_forward_pallas.1} parent=102 // loop_exit
                  _
              $region103: #{res2net_forward_pallas.1} parent=87 // pred_fallthru
                _
              // Predicated region
              $region111: #{res2net_forward_pallas.1} parent=87 // pred_check
                _
              $region112: #{res2net_forward_pallas.1} parent=87 // pred_check_branch
                %497 = sbr.rel target = $region114
              $region113: #{res2net_forward_pallas.1} parent=87 // pred_region
                _
              $region114: #{res2net_forward_pallas.1} parent=87 // pred_fallthru
                _
            $region88: #{res2net_forward_pallas.1} parent=83 // pred_fallthru
              _
            // Predicated region
            $region89: #{res2net_forward_pallas.1} parent=83 // pred_check
              _
            $region90: #{res2net_forward_pallas.1} parent=83 // pred_check_branch
              %467 = sbr.rel target = $region92
            $region91: #{res2net_forward_pallas.1} parent=83 // pred_region
              %s469 = ssub.s32 256, 1
              loop: start=0, step=1, limit=1
              $region93: #{res2net_forward_pallas.1} parent=91 // loop_pre_header
                _
              $region94: #{res2net_forward_pallas.1} parent=91 // loop_header
                %s471 = sphi 0, %s475
                %p472 = scmp.ge.s32.totalorder %s471, 1
                %s476 = sphi %s461, %s461
                %s477 = sphi %s459, %s459
              $region95: #{res2net_forward_pallas.1} parent=91 // loop_header_branch
                %474 = sbr.rel (%p472) target = $region99
              $region96: #{res2net_forward_pallas.1} parent=91 // loop_body
                %v478 = vld [vmem:[%s476] sm:%s469]
                %479 = vst [vmem:[%s477] sm:%s469] %v478
                %v480 = vld [vmem:[%s476 + $0x10] sm:%s469]
                %481 = vst [vmem:[%s477 + $0x8] sm:%s469] %v480
              $region97: #{res2net_forward_pallas.1} parent=91 // loop_footer
                %s475 = sadd.s32 1, %s471
              $region98: #{res2net_forward_pallas.1} parent=91 // loop_footer_branch
                %470 = sbr.rel target = $region94
              $region99: #{res2net_forward_pallas.1} parent=91 // loop_exit
                _
            $region92: #{res2net_forward_pallas.1} parent=83 // pred_fallthru
              _
          $region84: #{res2net_forward_pallas.1} parent=79 // pred_fallthru
            _
          %498 = vnop
        $region80: #{res2net_forward_pallas.1} parent=75 // pred_fallthru
          _
      $region76: #{res2net_forward_pallas.1} parent=5 // pred_fallthru
        _
      %p499 = scmp.le.s32.totalorder 1, %s22
      %p500 = scmp.lt.s32.totalorder %s22, 3
      %p501 = pnand %p499, %p500
      %p502 = pneg %p501
      // Predicated region
      $region115: #{res2net_forward_pallas.1} parent=5 // pred_check
        _
      $region116: #{res2net_forward_pallas.1} parent=5 // pred_check_branch
        %504 = sbr.rel (%p501) target = $region118
      $region117: #{res2net_forward_pallas.1} parent=5 // pred_region
        %s505 = ssub.s32 %s22, 1
        %s506 = sand.u32 %s35, 1
        %s507 = sand.u32 %s35, 1
        %s508 = smul.addr %s507, 16
        %s509 = scalar_lea.vmem [#allocation2], %s508
        // Predicated region
        $region119: #{res2net_forward_pallas.1} parent=117 // pred_check
          %p510 = pneg %p48
        $region120: #{res2net_forward_pallas.1} parent=117 // pred_check_branch
          %512 = sbr.rel (%p510) target = $region122
        $region121: #{res2net_forward_pallas.1} parent=117 // pred_region
          _
        $region122: #{res2net_forward_pallas.1} parent=117 // pred_fallthru
          _
        %s513 = sand.u32 %s35, 1
        %s514 = sand.u32 %s35, 1
        %s515 = smul.addr %s514, 16
        %s516 = scalar_lea.vmem [#allocation2], %s515
        %p517 = pneg %p48
        %p518 = pneg %p45
        %p519 = pneg %p69
        %p520 = pneg %p66
        %p521 = pneg %p90
        %p522 = pneg %p87
        %p523 = pneg %p111
        %p524 = pneg %p108
        %p525 = pneg %p132
        %p526 = pneg %p129
        %p527 = pneg %p153
        %p528 = pneg %p150
        %p529 = pneg %p174
        %p530 = pneg %p171
        %p531 = pneg %p195
        %p532 = pneg %p192
        %p533 = pneg %p216
        %p534 = pneg %p213
        %p535 = pneg %p237
        %p536 = pneg %p234
        %p537 = pneg %p258
        %p538 = pneg %p255
        %p539 = pneg %p279
        %p540 = pneg %p276
        %p541 = pneg %p300
        %p542 = pneg %p297
        %p543 = pneg %p321
        %p544 = pneg %p318
        %p545 = pneg %p342
        %p546 = pneg %p339
        %p547 = pneg %p363
        %p548 = pneg %p360
        %p549 = pneg %p389
        %p550 = pneg %p386
        %s551 = sand.u32 %s376, 1
        %s552 = sand.u32 %s376, 1
        %s553 = smul.addr %s552, 16
        %s554 = scalar_lea.vmem [#allocation3], %s553
        %v555 = vld [vmem:[%s509] sm:$0xff]
        %v556 = vld [vmem:[%s509 + $0x8] sm:$0xff]
        %v557 = vld [vmem:[%s1] sm:$0xff]
        %v558 = vld [vmem:[%s1 + $0x8] sm:$0x1]
        %v559 = vld [vmem:[%s2] sm:$0xff]
        %v560 = vld [vmem:[%s2 + $0x8] sm:$0xff]
        %v561 = vld [vmem:[%s2 + $0x10] sm:$0xff]
        %v562 = vld [vmem:[%s2 + $0x18] sm:$0xff]
        %v563 = vld [vmem:[%s3] sm:$0xff]
        %v564 = vld [vmem:[%s3 + $0x8] sm:$0xff]
        %v565 = vld [vmem:[%s3 + $0x10] sm:$0xff]
        %v566 = vld [vmem:[%s3 + $0x18] sm:$0xff]
        %568 = vset.pattern.permute.xlu0 0
        %569 = vperm.xlu0 %568, %v563
        %v570 = vpop.permute.xlu0 %569
        %573 = vset.pattern.permute.xlu0 0
        %574 = vperm.xlu0 %573, %v564
        %v575 = vpop.permute.xlu0 %574
        %578 = vset.pattern.permute.xlu0 0
        %579 = vperm.xlu0 %578, %v565
        %v580 = vpop.permute.xlu0 %579
        %583 = vset.pattern.permute.xlu0 0
        %584 = vperm.xlu0 %583, %v566
        %v585 = vpop.permute.xlu0 %584
        %vm587 = vcmask 130048
        %v589 = vsel %vm587, %v559, 0
        %v592 = vsel %vm587, %v560, 0
        %v595 = vsel %vm587, %v561, 0
        %v598 = vsel %vm587, %v562, 0
        %600 = vmatpush.msra.mxu0 0.0
        %601 = vmatpush.msra.mxu0 0.0
        %602 = vmatpush.msra.mxu0 0.0
        %603 = vmatpush.msra.mxu0 0.0
        %604 = vmatpush.msra.mxu0 0.0
        %605 = vmatpush.msra.mxu0 0.0
        %606 = vmatpush.msra.mxu0 0.0
        %607 = vmatpush.msra.mxu0 0.0
        %608 = vmatpush.msra.mxu0 0.0
        %609 = vmatpush.msra.mxu0 0.0
        %610 = vmatpush.msra.mxu0 0.0
        %611 = vmatpush.msra.mxu0 0.0
        %612 = vmatpush.msra.mxu0 0.0
        %613 = vmatpush.msra.mxu0 0.0
        %614 = vmatpush.msra.mxu0 %v556
        %615 = vmatpush.msra.mxu0 %v555
        %616 = vmatmul.f32.gmra.mxu0 %v589
        %v617 = vpop.f32.mrf.mxu0
        %v618 = vadd.f32 %v570, %v617
        %619 = vmatmul.f32.gmra.mxu0 %v592
        %v620 = vpop.f32.mrf.mxu0
        %v621 = vadd.f32 %v575, %v620
        %622 = vmatmul.f32.gmra.mxu0 %v595
        %v623 = vpop.f32.mrf.mxu0
        %v624 = vadd.f32 %v580, %v623
        %625 = vmatmul.f32.gmra.mxu0 %v598
        %v626 = vpop.f32.mrf.mxu0
        %v627 = vadd.f32 %v585, %v626
        %628 = vdwg.mxu0
        %v629 = vmax.f32 %v618, 0.0
        %v630 = vmax.f32 %v621, 0.0
        %v631 = vmax.f32 %v624, 0.0
        %v632 = vmax.f32 %v627, 0.0
        %633 = vrot.lane.b32.xlu0 %v629, 9
        %v634 = vpop.permute.xlu0 %633
        %v635 = vperm.slane %v557, 0
        %v636 = vmul.f32 %v634, %v635
        %637 = vrot.lane.b32.xlu0 %v629, 8
        %v638 = vpop.permute.xlu0 %637
        %v639 = vperm.slane %v557, 1
        %v640 = vmul.f32 %v638, %v639
        %641 = vrot.lane.b32.xlu0 %v629, 7
        %v642 = vpop.permute.xlu0 %641
        %v643 = vperm.slane %v557, 2
        %v644 = vmul.f32 %v642, %v643
        %645 = vrot.lane.b32.xlu0 %v629, 1
        %v646 = vpop.permute.xlu0 %645
        %v647 = vperm.slane %v557, 3
        %v648 = vmul.f32 %v646, %v647
        %649 = vrot.lane.b32.xlu0 %v629, 127
        %v650 = vpop.permute.xlu0 %649
        %v651 = vperm.slane %v557, 5
        %v652 = vmul.f32 %v650, %v651
        %653 = vrot.lane.b32.xlu0 %v629, 121
        %v654 = vpop.permute.xlu0 %653
        %v655 = vperm.slane %v557, 6
        %v656 = vmul.f32 %v654, %v655
        %657 = vrot.lane.b32.xlu0 %v629, 120
        %v658 = vpop.permute.xlu0 %657
        %v659 = vperm.slane %v557, 7
        %v660 = vmul.f32 %v658, %v659
        %661 = vrot.lane.b32.xlu0 %v629, 119
        %v662 = vpop.permute.xlu0 %661
        %v663 = vperm.slane %v558, 0
        %v664 = vmul.f32 %v662, %v663
        %v665 = vld [vmem:[%s4] sm:$0xff]
        %v666 = vld [vmem:[%s5] sm:$0xff]
        %668 = vset.pattern.permute.xlu0 0
        %669 = vperm.xlu0 %668, %v666
        %v670 = vpop.permute.xlu0 %669
        %vm672 = vcmask 588800
        %v674 = vsel %vm672, %v665, 0
        %676 = vmatpush.msra.mxu0 0.0
        %677 = vmatpush.msra.mxu0 0.0
        %678 = vmatpush.msra.mxu0 0.0
        %679 = vmatpush.msra.mxu0 0.0
        %680 = vmatpush.msra.mxu0 0.0
        %681 = vmatpush.msra.mxu0 0.0
        %682 = vmatpush.msra.mxu0 0.0
        %683 = vmatpush.msra.mxu0 %v664
        %684 = vmatpush.msra.mxu0 %v660
        %685 = vmatpush.msra.mxu0 %v656
        %686 = vmatpush.msra.mxu0 %v652
        %687 = vmatpush.msra.mxu0 %v629
        %688 = vmatpush.msra.mxu0 %v648
        %689 = vmatpush.msra.mxu0 %v644
        %690 = vmatpush.msra.mxu0 %v640
        %691 = vmatpush.msra.mxu0 %v636
        %692 = vmatmul.f32.gmra.mxu0 %v674
        %v693 = vpop.f32.mrf.mxu0
        %v694 = vadd.f32 %v670, %v693
        %695 = vdwg.mxu0
        %v696 = vmax.f32 %v694, 0.0
        %v697 = vadd.f32 %v630, %v696
        %698 = vrot.lane.b32.xlu0 %v697, 9
        %v699 = vpop.permute.xlu0 %698
        %v700 = vmul.f32 %v699, %v635
        %701 = vrot.lane.b32.xlu0 %v697, 8
        %v702 = vpop.permute.xlu0 %701
        %v703 = vmul.f32 %v702, %v639
        %704 = vrot.lane.b32.xlu0 %v697, 7
        %v705 = vpop.permute.xlu0 %704
        %v706 = vmul.f32 %v705, %v643
        %707 = vrot.lane.b32.xlu0 %v697, 1
        %v708 = vpop.permute.xlu0 %707
        %v709 = vmul.f32 %v708, %v647
        %710 = vrot.lane.b32.xlu0 %v697, 127
        %v711 = vpop.permute.xlu0 %710
        %v712 = vmul.f32 %v711, %v651
        %713 = vrot.lane.b32.xlu0 %v697, 121
        %v714 = vpop.permute.xlu0 %713
        %v715 = vmul.f32 %v714, %v655
        %716 = vrot.lane.b32.xlu0 %v697, 120
        %v717 = vpop.permute.xlu0 %716
        %v718 = vmul.f32 %v717, %v659
        %719 = vrot.lane.b32.xlu0 %v697, 119
        %v720 = vpop.permute.xlu0 %719
        %v721 = vmul.f32 %v720, %v663
        %v722 = vld [vmem:[%s6] sm:$0xff]
        %v723 = vld [vmem:[%s7] sm:$0xff]
        %725 = vset.pattern.permute.xlu0 0
        %726 = vperm.xlu0 %725, %v723
        %v727 = vpop.permute.xlu0 %726
        %v730 = vsel %vm672, %v722, 0
        %732 = vmatpush.msra.mxu0 0.0
        %733 = vmatpush.msra.mxu0 0.0
        %734 = vmatpush.msra.mxu0 0.0
        %735 = vmatpush.msra.mxu0 0.0
        %736 = vmatpush.msra.mxu0 0.0
        %737 = vmatpush.msra.mxu0 0.0
        %738 = vmatpush.msra.mxu0 0.0
        %739 = vmatpush.msra.mxu0 %v721
        %740 = vmatpush.msra.mxu0 %v718
        %741 = vmatpush.msra.mxu0 %v715
        %742 = vmatpush.msra.mxu0 %v712
        %743 = vmatpush.msra.mxu0 %v697
        %744 = vmatpush.msra.mxu0 %v709
        %745 = vmatpush.msra.mxu0 %v706
        %746 = vmatpush.msra.mxu0 %v703
        %747 = vmatpush.msra.mxu0 %v700
        %748 = vmatmul.f32.gmra.mxu0 %v730
        %v749 = vpop.f32.mrf.mxu0
        %v750 = vadd.f32 %v727, %v749
        %751 = vdwg.mxu0
        %v752 = vmax.f32 %v750, 0.0
        %v753 = vadd.f32 %v631, %v752
        %754 = vrot.lane.b32.xlu0 %v753, 9
        %v755 = vpop.permute.xlu0 %754
        %v756 = vmul.f32 %v755, %v635
        %757 = vrot.lane.b32.xlu0 %v753, 8
        %v758 = vpop.permute.xlu0 %757
        %v759 = vmul.f32 %v758, %v639
        %760 = vrot.lane.b32.xlu0 %v753, 7
        %v761 = vpop.permute.xlu0 %760
        %v762 = vmul.f32 %v761, %v643
        %763 = vrot.lane.b32.xlu0 %v753, 1
        %v764 = vpop.permute.xlu0 %763
        %v765 = vmul.f32 %v764, %v647
        %766 = vrot.lane.b32.xlu0 %v753, 127
        %v767 = vpop.permute.xlu0 %766
        %v768 = vmul.f32 %v767, %v651
        %769 = vrot.lane.b32.xlu0 %v753, 121
        %v770 = vpop.permute.xlu0 %769
        %v771 = vmul.f32 %v770, %v655
        %772 = vrot.lane.b32.xlu0 %v753, 120
        %v773 = vpop.permute.xlu0 %772
        %v774 = vmul.f32 %v773, %v659
        %775 = vrot.lane.b32.xlu0 %v753, 119
        %v776 = vpop.permute.xlu0 %775
        %v777 = vmul.f32 %v776, %v663
        %v778 = vld [vmem:[%s8] sm:$0xff]
        %v779 = vld [vmem:[%s9] sm:$0xff]
        %781 = vset.pattern.permute.xlu0 0
        %782 = vperm.xlu0 %781, %v779
        %v783 = vpop.permute.xlu0 %782
        %v786 = vsel %vm672, %v778, 0
        %788 = vmatpush.msra.mxu0 0.0
        %789 = vmatpush.msra.mxu0 0.0
        %790 = vmatpush.msra.mxu0 0.0
        %791 = vmatpush.msra.mxu0 0.0
        %792 = vmatpush.msra.mxu0 0.0
        %793 = vmatpush.msra.mxu0 0.0
        %794 = vmatpush.msra.mxu0 0.0
        %795 = vmatpush.msra.mxu0 %v777
        %796 = vmatpush.msra.mxu0 %v774
        %797 = vmatpush.msra.mxu0 %v771
        %798 = vmatpush.msra.mxu0 %v768
        %799 = vmatpush.msra.mxu0 %v753
        %800 = vmatpush.msra.mxu0 %v765
        %801 = vmatpush.msra.mxu0 %v762
        %802 = vmatpush.msra.mxu0 %v759
        %803 = vmatpush.msra.mxu0 %v756
        %804 = vmatmul.f32.gmra.mxu0 %v786
        %v805 = vpop.f32.mrf.mxu0
        %v806 = vadd.f32 %v783, %v805
        %807 = vdwg.mxu0
        %v808 = vmax.f32 %v806, 0.0
        %v809 = vadd.f32 %v632, %v808
        %810 = vrot.lane.b32.xlu0 %v809, 9
        %v811 = vpop.permute.xlu0 %810
        %v812 = vmul.f32 %v811, %v635
        %813 = vrot.lane.b32.xlu0 %v809, 8
        %v814 = vpop.permute.xlu0 %813
        %v815 = vmul.f32 %v814, %v639
        %816 = vrot.lane.b32.xlu0 %v809, 7
        %v817 = vpop.permute.xlu0 %816
        %v818 = vmul.f32 %v817, %v643
        %819 = vrot.lane.b32.xlu0 %v809, 1
        %v820 = vpop.permute.xlu0 %819
        %v821 = vmul.f32 %v820, %v647
        %822 = vrot.lane.b32.xlu0 %v809, 127
        %v823 = vpop.permute.xlu0 %822
        %v824 = vmul.f32 %v823, %v651
        %825 = vrot.lane.b32.xlu0 %v809, 121
        %v826 = vpop.permute.xlu0 %825
        %v827 = vmul.f32 %v826, %v655
        %828 = vrot.lane.b32.xlu0 %v809, 120
        %v829 = vpop.permute.xlu0 %828
        %v830 = vmul.f32 %v829, %v659
        %831 = vrot.lane.b32.xlu0 %v809, 119
        %v832 = vpop.permute.xlu0 %831
        %v833 = vmul.f32 %v832, %v663
        %v834 = vld [vmem:[%s10] sm:$0xff]
        %v835 = vld [vmem:[%s11] sm:$0xff]
        %837 = vset.pattern.permute.xlu0 0
        %838 = vperm.xlu0 %837, %v835
        %v839 = vpop.permute.xlu0 %838
        %v842 = vsel %vm672, %v834, 0
        %844 = vmatpush.msra.mxu0 0.0
        %845 = vmatpush.msra.mxu0 0.0
        %846 = vmatpush.msra.mxu0 0.0
        %847 = vmatpush.msra.mxu0 0.0
        %848 = vmatpush.msra.mxu0 0.0
        %849 = vmatpush.msra.mxu0 0.0
        %850 = vmatpush.msra.mxu0 0.0
        %851 = vmatpush.msra.mxu0 %v833
        %852 = vmatpush.msra.mxu0 %v830
        %853 = vmatpush.msra.mxu0 %v827
        %854 = vmatpush.msra.mxu0 %v824
        %855 = vmatpush.msra.mxu0 %v809
        %856 = vmatpush.msra.mxu0 %v821
        %857 = vmatpush.msra.mxu0 %v818
        %858 = vmatpush.msra.mxu0 %v815
        %859 = vmatpush.msra.mxu0 %v812
        %860 = vmatmul.f32.gmra.mxu0 %v842
        %v861 = vpop.f32.mrf.mxu0
        %v862 = vadd.f32 %v839, %v861
        %863 = vdwg.mxu0
        %v864 = vmax.f32 %v862, 0.0
        %v865 = vld [vmem:[%s12] sm:$0xff]
        %v866 = vld [vmem:[%s12 + $0x8] sm:$0xff]
        %v867 = vld [vmem:[%s13] sm:$0xff]
        %v868 = vld [vmem:[%s13 + $0x8] sm:$0xff]
        %870 = vset.pattern.permute.xlu0 0
        %871 = vperm.xlu0 %870, %v867
        %v872 = vpop.permute.xlu0 %871
        %875 = vset.pattern.permute.xlu0 0
        %876 = vperm.xlu0 %875, %v868
        %v877 = vpop.permute.xlu0 %876
        %vm879 = vcmask 261120
        %v881 = vsel %vm879, %v865, 0
        %v884 = vsel %vm879, %v866, 0
        %886 = vmatpush.msra.mxu0 0.0
        %887 = vmatpush.msra.mxu0 0.0
        %888 = vmatpush.msra.mxu0 0.0
        %889 = vmatpush.msra.mxu0 0.0
        %890 = vmatpush.msra.mxu0 0.0
        %891 = vmatpush.msra.mxu0 0.0
        %892 = vmatpush.msra.mxu0 0.0
        %893 = vmatpush.msra.mxu0 0.0
        %894 = vmatpush.msra.mxu0 0.0
        %895 = vmatpush.msra.mxu0 0.0
        %896 = vmatpush.msra.mxu0 0.0
        %897 = vmatpush.msra.mxu0 0.0
        %898 = vmatpush.msra.mxu0 %v864
        %899 = vmatpush.msra.mxu0 %v808
        %900 = vmatpush.msra.mxu0 %v752
        %901 = vmatpush.msra.mxu0 %v696
        %902 = vmatmul.f32.gmra.mxu0 %v881
        %v903 = vpop.f32.mrf.mxu0
        %v904 = vadd.f32 %v872, %v903
        %905 = vmatmul.f32.gmra.mxu0 %v884
        %v906 = vpop.f32.mrf.mxu0
        %v907 = vadd.f32 %v877, %v906
        %908 = vdwg.mxu0
        %v909 = vmax.f32 %v904, 0.0
        %v910 = vmax.f32 %v907, 0.0
        %v911 = vadd.f32 %v909, %v555
        %v912 = vadd.f32 %v910, %v556
        %913 = vrot.lane.b32.xlu0 %v911, 9
        %v914 = vpop.permute.xlu0 %913
        %915 = vrot.lane.b32.xlu0 %v912, 9
        %v916 = vpop.permute.xlu0 %915
        %v917 = vmul.f32 %v914, %v635
        %v918 = vmul.f32 %v916, %v635
        %919 = vrot.lane.b32.xlu0 %v911, 8
        %v920 = vpop.permute.xlu0 %919
        %921 = vrot.lane.b32.xlu0 %v912, 8
        %v922 = vpop.permute.xlu0 %921
        %v923 = vmul.f32 %v920, %v639
        %v924 = vmul.f32 %v922, %v639
        %925 = vrot.lane.b32.xlu0 %v911, 7
        %v926 = vpop.permute.xlu0 %925
        %927 = vrot.lane.b32.xlu0 %v912, 7
        %v928 = vpop.permute.xlu0 %927
        %v929 = vmul.f32 %v926, %v643
        %v930 = vmul.f32 %v928, %v643
        %931 = vrot.lane.b32.xlu0 %v911, 1
        %v932 = vpop.permute.xlu0 %931
        %933 = vrot.lane.b32.xlu0 %v912, 1
        %v934 = vpop.permute.xlu0 %933
        %v935 = vmul.f32 %v932, %v647
        %v936 = vmul.f32 %v934, %v647
        %937 = vrot.lane.b32.xlu0 %v911, 127
        %v938 = vpop.permute.xlu0 %937
        %939 = vrot.lane.b32.xlu0 %v912, 127
        %v940 = vpop.permute.xlu0 %939
        %v941 = vmul.f32 %v938, %v651
        %v942 = vmul.f32 %v940, %v651
        %943 = vrot.lane.b32.xlu0 %v911, 121
        %v944 = vpop.permute.xlu0 %943
        %945 = vrot.lane.b32.xlu0 %v912, 121
        %v946 = vpop.permute.xlu0 %945
        %v947 = vmul.f32 %v944, %v655
        %v948 = vmul.f32 %v946, %v655
        %949 = vrot.lane.b32.xlu0 %v911, 120
        %v950 = vpop.permute.xlu0 %949
        %951 = vrot.lane.b32.xlu0 %v912, 120
        %v952 = vpop.permute.xlu0 %951
        %v953 = vmul.f32 %v950, %v659
        %v954 = vmul.f32 %v952, %v659
        %955 = vrot.lane.b32.xlu0 %v911, 119
        %v956 = vpop.permute.xlu0 %955
        %957 = vrot.lane.b32.xlu0 %v912, 119
        %v958 = vpop.permute.xlu0 %957
        %v959 = vmul.f32 %v956, %v663
        %v960 = vmul.f32 %v958, %v663
        %v961 = vld [vmem:[%s14] sm:$0xff]
        %v962 = vld [vmem:[%s14 + $0x8] sm:$0xff]
        %v963 = vld [vmem:[%s14 + $0x10] sm:$0xff]
        %v964 = vld [vmem:[%s14 + $0x18] sm:$0xff]
        %v965 = vld [vmem:[%s15] sm:$0xff]
        %v966 = vld [vmem:[%s15 + $0x8] sm:$0xff]
        %968 = vset.pattern.permute.xlu0 0
        %969 = vperm.xlu0 %968, %v965
        %v970 = vpop.permute.xlu0 %969
        %973 = vset.pattern.permute.xlu0 0
        %974 = vperm.xlu0 %973, %v966
        %v975 = vpop.permute.xlu0 %974
        %v978 = vsel %vm587, %v962, 0
        %v981 = vsel %vm587, %v964, 0
        %983 = vmatpush.msra.mxu0 %v954
        %984 = vmatpush.msra.mxu0 %v953
        %985 = vmatpush.msra.mxu0 %v948
        %986 = vmatpush.msra.mxu0 %v947
        %987 = vmatpush.msra.mxu0 %v942
        %988 = vmatpush.msra.mxu0 %v941
        %989 = vmatpush.msra.mxu0 %v912
        %990 = vmatpush.msra.mxu0 %v911
        %991 = vmatpush.msra.mxu0 %v936
        %992 = vmatpush.msra.mxu0 %v935
        %993 = vmatpush.msra.mxu0 %v930
        %994 = vmatpush.msra.mxu0 %v929
        %995 = vmatpush.msra.mxu0 %v924
        %996 = vmatpush.msra.mxu0 %v923
        %997 = vmatpush.msra.mxu0 %v918
        %998 = vmatpush.msra.mxu0 %v917
        %999 = vmatmul.f32.gmra.mxu0 %v961
        %v1000 = vpop.f32.mrf.mxu0
        %v1001 = vadd.f32 %v970, %v1000
        %1002 = vmatmul.f32.gmra.mxu0 %v963
        %v1003 = vpop.f32.mrf.mxu0
        %v1004 = vadd.f32 %v975, %v1003
        %1005 = vdwg.mxu0
        %1006 = vmatpush.msra.mxu0 0.0
        %1007 = vmatpush.msra.mxu0 0.0
        %1008 = vmatpush.msra.mxu0 0.0
        %1009 = vmatpush.msra.mxu0 0.0
        %1010 = vmatpush.msra.mxu0 0.0
        %1011 = vmatpush.msra.mxu0 0.0
        %1012 = vmatpush.msra.mxu0 0.0
        %1013 = vmatpush.msra.mxu0 0.0
        %1014 = vmatpush.msra.mxu0 0.0
        %1015 = vmatpush.msra.mxu0 0.0
        %1016 = vmatpush.msra.mxu0 0.0
        %1017 = vmatpush.msra.mxu0 0.0
        %1018 = vmatpush.msra.mxu0 0.0
        %1019 = vmatpush.msra.mxu0 0.0
        %1020 = vmatpush.msra.mxu0 %v960
        %1021 = vmatpush.msra.mxu0 %v959
        %1022 = vmatmul.f32.gmra.mxu0 %v978
        %v1023 = vpop.f32.mrf.mxu0
        %v1024 = vadd.f32 %v1001, %v1023
        %1025 = vmatmul.f32.gmra.mxu0 %v981
        %v1026 = vpop.f32.mrf.mxu0
        %v1027 = vadd.f32 %v1004, %v1026
        %1028 = vdwg.mxu0
        %v1029 = vmax.f32 %v1024, 0.0
        %v1030 = vmax.f32 %v1027, 0.0
        %1031 = vst [vmem:[%s554] sm:$0xff] %v1029
        %1032 = vst [vmem:[%s554 + $0x8] sm:$0xff] %v1030
        %s1033 = sand.u32 %s376, 1
        %s1034 = sand.u32 %s376, 1
        %s1035 = smul.addr %s1034, 16
        %s1036 = scalar_lea.vmem [#allocation3], %s1035
        // Predicated region
        $region123: #{res2net_forward_pallas.1} parent=117 // pred_check
          %p1037 = pneg %p386
        $region124: #{res2net_forward_pallas.1} parent=117 // pred_check_branch
          %1039 = sbr.rel (%p1037) target = $region126
        $region125: #{res2net_forward_pallas.1} parent=117 // pred_region
          %s1040 = smul.addr %s27, 8
          %s1041 = scalar_lea.vmem %s16, %s1040
          // Predicated region
          $region127: #{res2net_forward_pallas.1} parent=125 // pred_check
            _
          $region128: #{res2net_forward_pallas.1} parent=125 // pred_check_branch
            %1043 = sbr.rel (0) target = $region130
          $region129: #{res2net_forward_pallas.1} parent=125 // pred_region
            // Predicated region
            $region131: #{res2net_forward_pallas.1} parent=129 // pred_check
              _
            $region132: #{res2net_forward_pallas.1} parent=129 // pred_check_branch
              %1045 = sbr.rel (0) target = $region134
            $region133: #{res2net_forward_pallas.1} parent=129 // pred_region
              // Predicated region
              $region146: #{res2net_forward_pallas.1} parent=133 // pred_check
                _
              $region147: #{res2net_forward_pallas.1} parent=133 // pred_check_branch
                %1063 = sbr.rel (0) target = $region149
              $region148: #{res2net_forward_pallas.1} parent=133 // pred_region
                loop: start=0, step=1, limit=1
                $region150: #{res2net_forward_pallas.1} parent=148 // loop_pre_header
                  _
                $region151: #{res2net_forward_pallas.1} parent=148 // loop_header
                  %s1065 = sphi 0, %s1069
                  %p1066 = scmp.ge.s32.totalorder %s1065, 1
                  %s1070 = sphi %s1036, %s1036
                  %s1071 = sphi %s1041, %s1041
                $region152: #{res2net_forward_pallas.1} parent=148 // loop_header_branch
                  %1068 = sbr.rel (%p1066) target = $region156
                $region153: #{res2net_forward_pallas.1} parent=148 // loop_body
                  %v1072 = vld [vmem:[%s1070] sm:$0xff]
                  %1073 = vst [vmem:[%s1071] sm:$0xff] %v1072
                  %v1074 = vld [vmem:[%s1070 + $0x8] sm:$0xff]
                  %1075 = vst [vmem:[%s1071 + $0x10] sm:$0xff] %v1074
                $region154: #{res2net_forward_pallas.1} parent=148 // loop_footer
                  %s1069 = sadd.s32 1, %s1065
                $region155: #{res2net_forward_pallas.1} parent=148 // loop_footer_branch
                  %1064 = sbr.rel target = $region151
                $region156: #{res2net_forward_pallas.1} parent=148 // loop_exit
                  _
              $region149: #{res2net_forward_pallas.1} parent=133 // pred_fallthru
                _
              // Predicated region
              $region157: #{res2net_forward_pallas.1} parent=133 // pred_check
                _
              $region158: #{res2net_forward_pallas.1} parent=133 // pred_check_branch
                %1077 = sbr.rel target = $region160
              $region159: #{res2net_forward_pallas.1} parent=133 // pred_region
                _
              $region160: #{res2net_forward_pallas.1} parent=133 // pred_fallthru
                _
            $region134: #{res2net_forward_pallas.1} parent=129 // pred_fallthru
              _
            // Predicated region
            $region135: #{res2net_forward_pallas.1} parent=129 // pred_check
              _
            $region136: #{res2net_forward_pallas.1} parent=129 // pred_check_branch
              %1047 = sbr.rel target = $region138
            $region137: #{res2net_forward_pallas.1} parent=129 // pred_region
              %s1049 = ssub.s32 256, 1
              loop: start=0, step=1, limit=1
              $region139: #{res2net_forward_pallas.1} parent=137 // loop_pre_header
                _
              $region140: #{res2net_forward_pallas.1} parent=137 // loop_header
                %s1051 = sphi 0, %s1055
                %p1052 = scmp.ge.s32.totalorder %s1051, 1
                %s1056 = sphi %s1036, %s1036
                %s1057 = sphi %s1041, %s1041
              $region141: #{res2net_forward_pallas.1} parent=137 // loop_header_branch
                %1054 = sbr.rel (%p1052) target = $region145
              $region142: #{res2net_forward_pallas.1} parent=137 // loop_body
                %v1058 = vld [vmem:[%s1056] sm:%s1049]
                %1059 = vst [vmem:[%s1057] sm:%s1049] %v1058
                %v1060 = vld [vmem:[%s1056 + $0x8] sm:%s1049]
                %1061 = vst [vmem:[%s1057 + $0x10] sm:%s1049] %v1060
              $region143: #{res2net_forward_pallas.1} parent=137 // loop_footer
                %s1055 = sadd.s32 1, %s1051
              $region144: #{res2net_forward_pallas.1} parent=137 // loop_footer_branch
                %1050 = sbr.rel target = $region140
              $region145: #{res2net_forward_pallas.1} parent=137 // loop_exit
                _
            $region138: #{res2net_forward_pallas.1} parent=129 // pred_fallthru
              _
          $region130: #{res2net_forward_pallas.1} parent=125 // pred_fallthru
            _
          %1078 = vnop
        $region126: #{res2net_forward_pallas.1} parent=117 // pred_fallthru
          _
      $region118: #{res2net_forward_pallas.1} parent=5 // pred_fallthru
        _
      %p1079 = scmp.le.s32.totalorder 2, %s22
      // Predicated region
      $region161: #{res2net_forward_pallas.1} parent=5 // pred_check
        %p1080 = pneg %p1079
      $region162: #{res2net_forward_pallas.1} parent=5 // pred_check_branch
        %1082 = sbr.rel (%p1080) target = $region164
      $region163: #{res2net_forward_pallas.1} parent=5 // pred_region
        %s1083 = ssub.s32 %s22, 2
        // Predicated region
        $region165: #{res2net_forward_pallas.1} parent=163 // pred_check
          %p1084 = pneg %p392
        $region166: #{res2net_forward_pallas.1} parent=163 // pred_check_branch
          %1086 = sbr.rel (%p1084) target = $region168
        $region167: #{res2net_forward_pallas.1} parent=163 // pred_region
          %s1087 = sand.u32 %s377, 1
          %s1088 = sand.u32 %s377, 1
          %s1089 = smul.addr %s1088, 16
          %s1090 = scalar_lea.vmem [#allocation3], %s1089
        $region168: #{res2net_forward_pallas.1} parent=163 // pred_fallthru
          _
      $region164: #{res2net_forward_pallas.1} parent=5 // pred_fallthru
        _
    $region6: #{res2net_forward_pallas.1} parent=1 // loop_footer
      %s26 = sadd.s32 1, %s22
    $region7: #{res2net_forward_pallas.1} parent=1 // loop_footer_branch
      %21 = sbr.rel target = $region3
    $region8: #{res2net_forward_pallas.1} parent=1 // loop_exit
      _

</llo_original>
